<compile_context>
chip_gen: v7x
topology: tpu7x:2x2x1
jax: 0.10.0
libtpu: 0.0.40
codegen_flags: <defaults>
</compile_context>

<pallas_src>
import jax
import jax.numpy as jnp
from jax import lax
from jax.experimental import pallas as pl
from jax.experimental.pallas import tpu as pltpu


_DEF_TILE_ROWS = 512            # >=512 rows keeps v5e near its HBM roofline;
                                # ~180 KB double-buffered -> safe on v5e/v6e/v7x.
_VMEM_LIMIT = 32 * 1024 * 1024  # explicit scoped-VMEM limit, valid on all gens.


def _row_tile(n_rows, preferred=_DEF_TILE_ROWS):
    """Row tile: the full array if small (block == full dim is always legal),
    else `preferred` (multiple of 8; ragged tail handled as a partial block)."""
    return n_rows if n_rows <= preferred else preferred


# ----------------------------------------------------------------------------
# Kernel 1: conv-as-matmul  ->  ReLU(patches @ Wc + bc)
# Gridded over rows; weights/bias resident in VMEM across grid steps.
# ----------------------------------------------------------------------------
def _conv_kernel(p_ref, w_ref, b_ref, o_ref):
    acc = jnp.dot(p_ref[...], w_ref[...], preferred_element_type=jnp.float32)
    o_ref[...] = jnp.maximum(acc + b_ref[...], 0.0).astype(o_ref.dtype)


def conv_matmul_pallas(patches, w, b):
    """ReLU(patches @ w + b).

    patches: (M, K) compute dtype (bf16 fast path / f32 check path).
    w:       (K, Cout) same compute dtype (1/255 prescale folded in).
    b:       (1, Cout) f32.
    """
    M, K = patches.shape
    Cout = w.shape[1]
    tm = _row_tile(M)
    psz = jnp.dtype(patches.dtype).itemsize
    wsz = jnp.dtype(w.dtype).itemsize
    return pl.pallas_call(
        _conv_kernel,
        out_shape=jax.ShapeDtypeStruct((M, Cout), w.dtype),
        grid=(pl.cdiv(M, tm),),
        in_specs=[
            # TODO(synk): add pipeline_mode=pl.Buffered(3) here if profiling
            # shows exposed DMA on v5e (tile is only ~36 KB in bf16).
            pl.BlockSpec((tm, K), lambda i: (i, 0)),
            pl.BlockSpec((K, Cout), lambda i: (0, 0)),   # resident weights
            pl.BlockSpec((1, Cout), lambda i: (0, 0)),   # resident bias
        ],
        out_specs=pl.BlockSpec((tm, Cout), lambda i: (i, 0)),
        compiler_params=pltpu.CompilerParams(
            dimension_semantics=("parallel",),
            vmem_limit_bytes=_VMEM_LIMIT),
        cost_estimate=pl.CostEstimate(
            flops=2 * M * K * Cout,
            transcendentals=0,
            bytes_accessed=M * K * psz + K * Cout * wsz + Cout * 4
                           + M * Cout * wsz),
    )(patches, w, b)


# ----------------------------------------------------------------------------
# Kernel 2: fused MLP  ->  h2 = ReLU(ReLU(x @ W1 + b1) @ W2 + b2)
# Gridded over batch rows; all weights resident in VMEM; h1 never leaves VMEM.
# ----------------------------------------------------------------------------
def _mlp_kernel(x_ref, w1_ref, b1_ref, w2_ref, b2_ref, o_ref):
    h1 = jnp.dot(x_ref[...], w1_ref[...], preferred_element_type=jnp.float32)
    h1 = jnp.maximum(h1 + b1_ref[...], 0.0)
    h2 = jnp.dot(h1.astype(w2_ref.dtype), w2_ref[...],
                 preferred_element_type=jnp.float32)
    o_ref[...] = jnp.maximum(h2 + b2_ref[...], 0.0).astype(o_ref.dtype)


def mlp_pallas(x, w1, b1, w2, b2):
    """x (B, K1) compute dtype; w1 (K1, N1) / w2 (N1, N2) compute dtype;
    biases (1, N) f32.  Output f32 (module fidelity).
    """
    B, K1 = x.shape
    N1 = w1.shape[1]
    N2 = w2.shape[1]
    tb = _row_tile(B)
    xsz = jnp.dtype(x.dtype).itemsize
    wsz = jnp.dtype(w1.dtype).itemsize
    # TODO(synk): emit bf16 output if the downstream actor/critic head
    # tolerates it (denser lane stores); kept f32 to match the torch module.
    return pl.pallas_call(
        _mlp_kernel,
        out_shape=jax.ShapeDtypeStruct((B, N2), jnp.float32),
        grid=(pl.cdiv(B, tb),),
        in_specs=[
            pl.BlockSpec((tb, K1), lambda i: (i, 0)),
            pl.BlockSpec((K1, N1), lambda i: (0, 0)),    # resident
            pl.BlockSpec((1, N1), lambda i: (0, 0)),     # resident
            pl.BlockSpec((N1, N2), lambda i: (0, 0)),    # resident
            pl.BlockSpec((1, N2), lambda i: (0, 0)),     # resident
        ],
        out_specs=pl.BlockSpec((tb, N2), lambda i: (i, 0)),
        compiler_params=pltpu.CompilerParams(
            dimension_semantics=("parallel",),
            vmem_limit_bytes=_VMEM_LIMIT),
        cost_estimate=pl.CostEstimate(
            flops=2 * B * K1 * N1 + 2 * B * N1 * N2,
            transcendentals=0,
            bytes_accessed=(B * K1 * xsz + K1 * N1 * wsz + N1 * 4
                            + N1 * N2 * wsz + N2 * 4 + B * N2 * 4)),
    )(x, w1, b1, w2, b2)


# ----------------------------------------------------------------------------
# Forward pass (glue: one XLA identity-conv im2col + two free reshapes)
# ----------------------------------------------------------------------------
def cnn_base_forward(pp, x, *, kernel_size=3):
    """x: (B, C, H, W) raw 0-255 observations."""
    B, C, H, W = x.shape
    k = kernel_size
    Ho, Wo = H - k + 1, W - k + 1
    Cout = pp["conv_w"].shape[1]
    cdt = pp["conv_w"].dtype

    # im2col as one XLA op: identity-kernel conv, NHWC output so the following
    # reshape is contiguous (no copy).  Run in the MXU compute dtype so the
    # 9x-expanded patch tensor lands in HBM at half width on the bf16 path
    # (the identity gather itself is exact in bf16).
    # TODO(synk): for large rollout batches move im2col into the conv kernel
    # (x via pl.ANY + k*k static shifted slices in VMEM) to remove this HBM
    # expansion entirely; at tiny B the single XLA op is cheaper.
    patches = lax.conv_general_dilated(
        x.astype(cdt), pp["im2col_w"], window_strides=(1, 1), padding="VALID",
        dimension_numbers=("NCHW", "OIHW", "NHWC"))          # (B, Ho, Wo, C*k*k)
    patches = patches.reshape(B * Ho * Wo, C * k * k)

    # Conv2d (+ folded 1/255 prescale) + ReLU, gridded over rows.
    conv = conv_matmul_pallas(patches, pp["conv_w"], pp["conv_b"])  # (B*Ho*Wo, Cout)

    # Free row-major reshape; the NCHW flatten permutation is folded into fc1_w.
    flat = conv.reshape(B, Ho * Wo * Cout)

    # TODO(synk): for the per-env-step latency path (B~2) fuse conv+MLP into
    # one pallas_call; that needs an in-kernel (Ho*Wo, Cout)->(1, Ho*Wo*Cout)
    # relayout which Mosaic handles poorly at these odd shapes, so two calls
    # with a metadata-only HBM reshape in between are kept.
    return mlp_pallas(flat, pp["fc1_w"], pp["fc1_b"], pp["fc2_w"], pp["fc2_b"])


# ----------------------------------------------------------------------------
# Parameters: torch-layout synthetic params + kernel-ready prepared params
# ----------------------------------------------------------------------------
def make_params(key, obs_shape, hidden_size, kernel_size=3, stride=1):
    # obs_shape follows the torch module: (input_channel, input_width, input_height)
    assert stride == 1, "TODO(synk): stride > 1 not implemented (module default is 1)"
    C, W, H = obs_shape
    k = kernel_size
    Cout = hidden_size // 2
    Ho, Wo = H - k + 1, W - k + 1
    flat_dim = Cout * Ho * Wo

    k0, k1, k2 = jax.random.split(key, 3)
    gain = jnp.sqrt(2.0)                   # relu gain, as nn.init.calculate_gain('relu')
    # TODO(synk): torch uses orthogonal_/xavier init; scaled normal used here.
    conv_w = gain * jax.random.normal(k0, (Cout, C, k, k), jnp.float32) / jnp.sqrt(C * k * k)
    fc1_w = gain * jax.random.normal(k1, (flat_dim, hidden_size), jnp.float32) / jnp.sqrt(flat_dim)
    fc2_w = gain * jax.random.normal(k2, (hidden_size, hidden_size), jnp.float32) / jnp.sqrt(hidden_size)
    return {
        "conv_w": conv_w,                                   # (Cout, C, k, k) torch OIHW
        "conv_b": jnp.zeros((Cout,), jnp.float32),
        "fc1_w": fc1_w,                                     # (Cout*Ho*Wo, hidden), NCHW-flatten rows
        "fc1_b": jnp.zeros((hidden_size,), jnp.float32),
        "fc2_w": fc2_w,
        "fc2_b": jnp.zeros((hidden_size,), jnp.float32),
    }


def prepare_pallas_params(params, obs_shape, kernel_size=3, stride=1,
                          compute_dtype=jnp.bfloat16):
    """One-time weight prep: fold 1/255, permute fc1 rows to the NHWC flatten
    order, cast weights to the MXU compute dtype (bf16 fast / f32 check)."""
    assert stride == 1, "TODO(synk): stride > 1 not implemented"
    C, W, H = obs_shape
    k = kernel_size
    Ho, Wo = H - k + 1, W - k + 1
    conv_w = params["conv_w"]                               # (Cout, C, k, k)
    Cout = conv_w.shape[0]
    hidden = params["fc1_w"].shape[1]

    # Identity im2col kernel: output feature o = ci*k*k + di*k + dj picks
    # x[ci, h+di, w+dj]  ->  matches torch's (ci, di, dj) weight flatten order.
    im2col_w = jnp.eye(C * k * k, dtype=compute_dtype).reshape(C * k * k, C, k, k)

    # Fold the x/255 prescale into the conv weight matrix; (K, Cout).
    wc = (conv_w.reshape(Cout, C * k * k).T / 255.0).astype(compute_dtype)

    # Permute fc1_w rows from torch's NCHW flatten (co, ho, wo) to the NHWC
    # flatten (ho, wo, co) produced by the Pallas conv output directly.
    w1 = params["fc1_w"].reshape(Cout, Ho, Wo, hidden)
    w1 = w1.transpose(1, 2, 0, 3).reshape(Ho * Wo * Cout, hidden).astype(compute_dtype)

    return {
        "im2col_w": im2col_w,                               # (C*k*k, C, k, k)
        "conv_w": wc,                                       # (C*k*k, Cout), /255 folded
        "conv_b": params["conv_b"].reshape(1, Cout).astype(jnp.float32),
        "fc1_w": w1,                                        # (Ho*Wo*Cout, hidden), permuted
        "fc1_b": params["fc1_b"].reshape(1, hidden).astype(jnp.float32),
        "fc2_w": params["fc2_w"].astype(compute_dtype),
        "fc2_b": params["fc2_b"].reshape(1, hidden).astype(jnp.float32),
    }


# ----------------------------------------------------------------------------
# Pure-JAX f32 reference (torch semantics) for correctness check only
# ----------------------------------------------------------------------------
def cnn_base_reference(params, x):
    xf = x.astype(jnp.float32) / 255.0
    conv = lax.conv_general_dilated(
        xf, params["conv_w"], window_strides=(1, 1), padding="VALID",
        dimension_numbers=("NCHW", "OIHW", "NCHW"))
    conv = jnp.maximum(conv + params["conv_b"][None, :, None, None], 0.0)
    flat = conv.reshape(conv.shape[0], -1)                  # NCHW flatten
    h1 = jnp.maximum(flat @ params["fc1_w"] + params["fc1_b"], 0.0)
    h2 = jnp.maximum(h1 @ params["fc2_w"] + params["fc2_b"], 0.0)
    return h2


if __name__ == "__main__":
    # Small shapes consistent with the module. Non-square spatial (H != W)
    # deliberately exercises the fc1 row-permutation (Ho=14 vs Wo=10).
    B, C, H, W = 2, 4, 16, 12
    hidden_size = 32
    obs_shape = (C, W, H)          # torch module ordering: (channel, width, height)

    key = jax.random.PRNGKey(0)
    kx, kp = jax.random.split(key)
    # Pixel-like observations in [0, 255).
    x = jax.random.uniform(kx, (B, C, H, W), jnp.float32, 0.0, 255.0)

    params = make_params(kp, obs_shape, hidden_size)             # torch-layout params
    ref = jax.block_until_ready(cnn_base_reference(params, x))

    fwd = jax.jit(cnn_base_forward)

    # (1) f32-weight check path: tight tolerance catches layout/permutation
    #     bugs that the looser bf16 tolerance could hide.
    pp_f32 = prepare_pallas_params(params, obs_shape, compute_dtype=jnp.float32)
    out_f32 = jax.block_until_ready(fwd(pp_f32, x))
    assert out_f32.shape == (B, hidden_size), out_f32.shape
    err_f32 = float(jnp.max(jnp.abs(out_f32 - ref)))
    assert jnp.allclose(out_f32, ref, rtol=1e-2, atol=1e-2), err_f32

    # (2) bf16 production path (patches + weights bf16, f32 accumulate).
    pp_bf16 = prepare_pallas_params(params, obs_shape, compute_dtype=jnp.bfloat16)
    out_bf16 = jax.block_until_ready(fwd(pp_bf16, x))
    assert out_bf16.shape == (B, hidden_size), out_bf16.shape
    err_bf16 = float(jnp.max(jnp.abs(out_bf16 - ref)))
    assert jnp.allclose(out_bf16, ref, rtol=5e-2, atol=5e-2), err_bf16

    print("KERNEL_OK")
</pallas_src>

<mosaic_0001>
module attributes {stable_mosaic.version = 11 : i64} {
  func.func @_conv_kernel(%arg0: i32, %arg1: memref<280x36xf32, #tpu.memory_space<vmem>>, %arg2: memref<36x16xf32, #tpu.memory_space<vmem>>, %arg3: memref<1x16xf32, #tpu.memory_space<vmem>>, %arg4: memref<280x16xf32, #tpu.memory_space<vmem>>) attributes {dimension_semantics = [#tpu.dimension_semantics<parallel>], iteration_bounds = array<i64: 1>, scalar_prefetch = 0 : i64, scratch_operands = 0 : i64, tpu.core_type = #tpu.core_type<tc>, window_params = [{transform_indices = @transform_0, window_bounds = array<i64: 280, 36>}, {pipeline_mode = #tpu.pipeline_mode<synchronous>, transform_indices = @transform_1, window_bounds = array<i64: 36, 16>}, {pipeline_mode = #tpu.pipeline_mode<synchronous>, transform_indices = @transform_2, window_bounds = array<i64: 1, 16>}, {transform_indices = @transform_3, window_bounds = array<i64: 280, 16>}]} {
    %c0 = arith.constant 0 : index
    %c0_0 = arith.constant 0 : index
    %0 = vector.load %arg1[%c0, %c0_0] : memref<280x36xf32, #tpu.memory_space<vmem>>, vector<280x36xf32>
    %c0_1 = arith.constant 0 : index
    %c0_2 = arith.constant 0 : index
    %1 = vector.load %arg2[%c0_1, %c0_2] : memref<36x16xf32, #tpu.memory_space<vmem>>, vector<36x16xf32>
    %cst = arith.constant dense<0.000000e+00> : vector<280x16xf32>
    %2 = tpu.matmul %0, %1, %cst {dimension_numbers = #tpu.dot_dimension_numbers<[1], [0], [0], [1], [0, 0, 1, 1], [], []>} : vector<280x36xf32>, vector<36x16xf32>, vector<280x16xf32> -> vector<280x16xf32>
    %c0_3 = arith.constant 0 : index
    %c0_4 = arith.constant 0 : index
    %3 = vector.load %arg3[%c0_3, %c0_4] : memref<1x16xf32, #tpu.memory_space<vmem>>, vector<1x16xf32>
    %4 = vector.broadcast %3 : vector<1x16xf32> to vector<280x16xf32>
    %5 = arith.addf %2, %4 : vector<280x16xf32>
    %cst_5 = arith.constant 0.000000e+00 : f32
    %6 = vector.broadcast %cst_5 : f32 to vector<280x16xf32>
    %7 = arith.maximumf %5, %6 : vector<280x16xf32>
    %c0_6 = arith.constant 0 : index
    %c0_7 = arith.constant 0 : index
    %8 = vector.load %arg4[%c0_6, %c0_7] : memref<280x16xf32, #tpu.memory_space<vmem>>, vector<280x16xf32>
    tpu.vector_store %arg4[%c0_6, %c0_7], %7 {strides = array<i32>} : memref<280x16xf32, #tpu.memory_space<vmem>>, vector<280x16xf32>,
    return
  }
  func.func @transform_0(%arg0: i32) -> (i32, i32) {
    %c0_i32 = arith.constant 0 : i32
    %c0_i32_0 = arith.constant 0 : i32
    return %arg0, %c0_i32 : i32, i32
  }
  func.func @transform_1(%arg0: i32) -> (i32, i32) {
    %c0_i32 = arith.constant 0 : i32
    %c0_i32_0 = arith.constant 0 : i32
    %c0_i32_1 = arith.constant 0 : i32
    return %c0_i32, %c0_i32_0 : i32, i32
  }
  func.func @transform_2(%arg0: i32) -> (i32, i32) {
    %c0_i32 = arith.constant 0 : i32
    %c0_i32_0 = arith.constant 0 : i32
    %c0_i32_1 = arith.constant 0 : i32
    return %c0_i32, %c0_i32_0 : i32, i32
  }
  func.func @transform_3(%arg0: i32) -> (i32, i32) {
    %c0_i32 = arith.constant 0 : i32
    %c0_i32_0 = arith.constant 0 : i32
    return %arg0, %c0_i32 : i32, i32
  }
}

module attributes {stable_mosaic.version = 11 : i64} {
  func.func @_mlp_kernel(%arg0: i32, %arg1: memref<2x2240xf32, #tpu.memory_space<vmem>>, %arg2: memref<2240x32xf32, #tpu.memory_space<vmem>>, %arg3: memref<1x32xf32, #tpu.memory_space<vmem>>, %arg4: memref<32x32xf32, #tpu.memory_space<vmem>>, %arg5: memref<1x32xf32, #tpu.memory_space<vmem>>, %arg6: memref<2x32xf32, #tpu.memory_space<vmem>>) attributes {dimension_semantics = [#tpu.dimension_semantics<parallel>], iteration_bounds = array<i64: 1>, scalar_prefetch = 0 : i64, scratch_operands = 0 : i64, tpu.core_type = #tpu.core_type<tc>, window_params = [{transform_indices = @transform_0, window_bounds = array<i64: 2, 2240>}, {pipeline_mode = #tpu.pipeline_mode<synchronous>, transform_indices = @transform_1, window_bounds = array<i64: 2240, 32>}, {pipeline_mode = #tpu.pipeline_mode<synchronous>, transform_indices = @transform_2, window_bounds = array<i64: 1, 32>}, {pipeline_mode = #tpu.pipeline_mode<synchronous>, transform_indices = @transform_3, window_bounds = array<i64: 32, 32>}, {pipeline_mode = #tpu.pipeline_mode<synchronous>, transform_indices = @transform_4, window_bounds = array<i64: 1, 32>}, {transform_indices = @transform_5, window_bounds = array<i64: 2, 32>}]} {
    %c0 = arith.constant 0 : index
    %c0_0 = arith.constant 0 : index
    %0 = vector.load %arg1[%c0, %c0_0] : memref<2x2240xf32, #tpu.memory_space<vmem>>, vector<2x2240xf32>
    %c0_1 = arith.constant 0 : index
    %c0_2 = arith.constant 0 : index
    %1 = vector.load %arg2[%c0_1, %c0_2] : memref<2240x32xf32, #tpu.memory_space<vmem>>, vector<2240x32xf32>
    %cst = arith.constant dense<0.000000e+00> : vector<2x32xf32>
    %2 = tpu.matmul %0, %1, %cst {dimension_numbers = #tpu.dot_dimension_numbers<[1], [0], [0], [1], [0, 0, 1, 1], [], []>} : vector<2x2240xf32>, vector<2240x32xf32>, vector<2x32xf32> -> vector<2x32xf32>
    %c0_3 = arith.constant 0 : index
    %c0_4 = arith.constant 0 : index
    %3 = vector.load %arg3[%c0_3, %c0_4] : memref<1x32xf32, #tpu.memory_space<vmem>>, vector<1x32xf32>
    %4 = vector.broadcast %3 : vector<1x32xf32> to vector<2x32xf32>
    %5 = arith.addf %2, %4 : vector<2x32xf32>
    %cst_5 = arith.constant 0.000000e+00 : f32
    %6 = vector.broadcast %cst_5 : f32 to vector<2x32xf32>
    %7 = arith.maximumf %5, %6 : vector<2x32xf32>
    %c0_6 = arith.constant 0 : index
    %c0_7 = arith.constant 0 : index
    %8 = vector.load %arg4[%c0_6, %c0_7] : memref<32x32xf32, #tpu.memory_space<vmem>>, vector<32x32xf32>
    %cst_8 = arith.constant dense<0.000000e+00> : vector<2x32xf32>
    %9 = tpu.matmul %7, %8, %cst_8 {dimension_numbers = #tpu.dot_dimension_numbers<[1], [0], [0], [1], [0, 0, 1, 1], [], []>} : vector<2x32xf32>, vector<32x32xf32>, vector<2x32xf32> -> vector<2x32xf32>
    %c0_9 = arith.constant 0 : index
    %c0_10 = arith.constant 0 : index
    %10 = vector.load %arg5[%c0_9, %c0_10] : memref<1x32xf32, #tpu.memory_space<vmem>>, vector<1x32xf32>
    %11 = vector.broadcast %10 : vector<1x32xf32> to vector<2x32xf32>
    %12 = arith.addf %9, %11 : vector<2x32xf32>
    %cst_11 = arith.constant 0.000000e+00 : f32
    %13 = vector.broadcast %cst_11 : f32 to vector<2x32xf32>
    %14 = arith.maximumf %12, %13 : vector<2x32xf32>
    %c0_12 = arith.constant 0 : index
    %c0_13 = arith.constant 0 : index
    %15 = vector.load %arg6[%c0_12, %c0_13] : memref<2x32xf32, #tpu.memory_space<vmem>>, vector<2x32xf32>
    tpu.vector_store %arg6[%c0_12, %c0_13], %14 {strides = array<i32>} : memref<2x32xf32, #tpu.memory_space<vmem>>, vector<2x32xf32>,
    return
  }
  func.func @transform_0(%arg0: i32) -> (i32, i32) {
    %c0_i32 = arith.constant 0 : i32
    %c0_i32_0 = arith.constant 0 : i32
    return %arg0, %c0_i32 : i32, i32
  }
  func.func @transform_1(%arg0: i32) -> (i32, i32) {
    %c0_i32 = arith.constant 0 : i32
    %c0_i32_0 = arith.constant 0 : i32
    %c0_i32_1 = arith.constant 0 : i32
    return %c0_i32, %c0_i32_0 : i32, i32
  }
  func.func @transform_2(%arg0: i32) -> (i32, i32) {
    %c0_i32 = arith.constant 0 : i32
    %c0_i32_0 = arith.constant 0 : i32
    %c0_i32_1 = arith.constant 0 : i32
    return %c0_i32, %c0_i32_0 : i32, i32
  }
  func.func @transform_3(%arg0: i32) -> (i32, i32) {
    %c0_i32 = arith.constant 0 : i32
    %c0_i32_0 = arith.constant 0 : i32
    %c0_i32_1 = arith.constant 0 : i32
    return %c0_i32, %c0_i32_0 : i32, i32
  }
  func.func @transform_4(%arg0: i32) -> (i32, i32) {
    %c0_i32 = arith.constant 0 : i32
    %c0_i32_0 = arith.constant 0 : i32
    %c0_i32_1 = arith.constant 0 : i32
    return %c0_i32, %c0_i32_0 : i32, i32
  }
  func.func @transform_5(%arg0: i32) -> (i32, i32) {
    %c0_i32 = arith.constant 0 : i32
    %c0_i32_0 = arith.constant 0 : i32
    return %arg0, %c0_i32 : i32, i32
  }
}

</mosaic_0001>

<llo_original>
// kernel: cnn_base_forward.2
$region0: #{cnn_base_forward.2}
  #allocation0 [shape = 'u32[]', space=smem, size = 0x4, offset = 0x4, fixed_abs, tag = 'smem constant byte address 0x4 - core index']
  #allocation1 [shape = 'u32[144,128]{1,0:T(1,128)}', space=vmem, size = 0x12000, scoped, tag = 'internal scratch']
  %s0 = inlined_call_operand.vmem [shape: f32[280,36], index: 0, kind: input, shape index: {}]
  %s1 = inlined_call_operand.vmem [shape: f32[36,16], index: 1, kind: input, shape index: {}]
  %s2 = inlined_call_operand.vmem [shape: f32[1,16], index: 2, kind: input, shape index: {}]
  %s3 = inlined_call_operand.vmem [shape: f32[280,16], index: 3, kind: output, shape index: {}]
  %s4 = sld [smem:[#allocation0]]
  $region22: #{cnn_base_forward.2} parent=0
    _
  %s6 = ssub.s32 1, %s4
  %s7 = scalar_select 0, %s6, %s4
  // Predicated region
  $region2: #{cnn_base_forward.2} parent=0 // pred_check
    _
  $region3: #{cnn_base_forward.2} parent=0 // pred_check_branch
    %9 = sbr.rel (0) target = $region5
  $region4: #{cnn_base_forward.2} parent=0 // pred_region
    _
  $region5: #{cnn_base_forward.2} parent=0 // pred_fallthru
    _
  // Predicated region
  $region6: #{cnn_base_forward.2} parent=0 // pred_check
    _
  $region7: #{cnn_base_forward.2} parent=0 // pred_check_branch
    %11 = sbr.rel (0) target = $region9
  $region8: #{cnn_base_forward.2} parent=0 // pred_region
    _
  $region9: #{cnn_base_forward.2} parent=0 // pred_fallthru
    _
  // Predicated region
  $region10: #{cnn_base_forward.2} parent=0 // pred_check
    _
  $region11: #{cnn_base_forward.2} parent=0 // pred_check_branch
    %13 = sbr.rel (0) target = $region13
  $region12: #{cnn_base_forward.2} parent=0 // pred_region
    _
  $region13: #{cnn_base_forward.2} parent=0 // pred_fallthru
    _
  %v14 = vld [vmem:[%s0] sm:$0xff]
  %v15 = vld [vmem:[%s0 + $0x8] sm:$0xff]
  %v16 = vld [vmem:[%s0 + $0x10] sm:$0xff]
  %v17 = vld [vmem:[%s0 + $0x18] sm:$0xff]
  %v18 = vld [vmem:[%s0 + $0x20] sm:$0xff]
  %v19 = vld [vmem:[%s0 + $0x28] sm:$0xff]
  %v20 = vld [vmem:[%s0 + $0x30] sm:$0xff]
  %v21 = vld [vmem:[%s0 + $0x38] sm:$0xff]
  %v22 = vld [vmem:[%s0 + $0x40] sm:$0xff]
  %v23 = vld [vmem:[%s0 + $0x48] sm:$0xff]
  %v24 = vld [vmem:[%s0 + $0x50] sm:$0xff]
  %v25 = vld [vmem:[%s0 + $0x58] sm:$0xff]
  %v26 = vld [vmem:[%s0 + $0x60] sm:$0xff]
  %v27 = vld [vmem:[%s0 + $0x68] sm:$0xff]
  %v28 = vld [vmem:[%s0 + $0x70] sm:$0xff]
  %v29 = vld [vmem:[%s0 + $0x78] sm:$0xff]
  %v30 = vld [vmem:[%s0 + $0x80] sm:$0xff]
  %v31 = vld [vmem:[%s0 + $0x88] sm:$0xff]
  %v32 = vld [vmem:[%s0 + $0x90] sm:$0xff]
  %v33 = vld [vmem:[%s0 + $0x98] sm:$0xff]
  %v34 = vld [vmem:[%s0 + $0xa0] sm:$0xff]
  %v35 = vld [vmem:[%s0 + $0xa8] sm:$0xff]
  %v36 = vld [vmem:[%s0 + $0xb0] sm:$0xff]
  %v37 = vld [vmem:[%s0 + $0xb8] sm:$0xff]
  %v38 = vld [vmem:[%s0 + $0xc0] sm:$0xff]
  %v39 = vld [vmem:[%s0 + $0xc8] sm:$0xff]
  %v40 = vld [vmem:[%s0 + $0xd0] sm:$0xff]
  %v41 = vld [vmem:[%s0 + $0xd8] sm:$0xff]
  %v42 = vld [vmem:[%s0 + $0xe0] sm:$0xff]
  %v43 = vld [vmem:[%s0 + $0xe8] sm:$0xff]
  %v44 = vld [vmem:[%s0 + $0xf0] sm:$0xff]
  %v45 = vld [vmem:[%s0 + $0xf8] sm:$0xff]
  %v46 = vld [vmem:[%s0 + $0x100] sm:$0xff]
  %v47 = vld [vmem:[%s0 + $0x108] sm:$0xff]
  %v48 = vld [vmem:[%s0 + $0x110] sm:$0xff]
  %v49 = vld [vmem:[%s1] sm:$0xff]
  %v50 = vld [vmem:[%s1 + $0x8] sm:$0xff]
  %v51 = vld [vmem:[%s1 + $0x10] sm:$0xff]
  %v52 = vld [vmem:[%s1 + $0x18] sm:$0xff]
  %v53 = vld [vmem:[%s1 + $0x20] sm:$0xf]
  %v54 = vld [vmem:[%s2] sm:$0x1]
  %v56 = vlaneseq
  %v57 = vshrl.u32 %v56, 7
  %v58 = vsub.s32 0, %v57
  %v59 = vrot.slane %v54, %v58
  %vm61 = vcmask 293888
  %v63 = vsel %vm61, %v14, 0
  %v66 = vsel %vm61, %v15, 0
  %v69 = vsel %vm61, %v16, 0
  %v72 = vsel %vm61, %v17, 0
  %v75 = vsel %vm61, %v18, 0
  %v78 = vsel %vm61, %v19, 0
  %v81 = vsel %vm61, %v20, 0
  %v84 = vsel %vm61, %v21, 0
  %v87 = vsel %vm61, %v22, 0
  %v90 = vsel %vm61, %v23, 0
  %v93 = vsel %vm61, %v24, 0
  %v96 = vsel %vm61, %v25, 0
  %v99 = vsel %vm61, %v26, 0
  %v102 = vsel %vm61, %v27, 0
  %v105 = vsel %vm61, %v28, 0
  %v108 = vsel %vm61, %v29, 0
  %v111 = vsel %vm61, %v30, 0
  %v114 = vsel %vm61, %v31, 0
  %v117 = vsel %vm61, %v32, 0
  %v120 = vsel %vm61, %v33, 0
  %v123 = vsel %vm61, %v34, 0
  %v126 = vsel %vm61, %v35, 0
  %v129 = vsel %vm61, %v36, 0
  %v132 = vsel %vm61, %v37, 0
  %v135 = vsel %vm61, %v38, 0
  %v138 = vsel %vm61, %v39, 0
  %v141 = vsel %vm61, %v40, 0
  %v144 = vsel %vm61, %v41, 0
  %v147 = vsel %vm61, %v42, 0
  %v150 = vsel %vm61, %v43, 0
  %v153 = vsel %vm61, %v44, 0
  %v156 = vsel %vm61, %v45, 0
  %v159 = vsel %vm61, %v46, 0
  %v162 = vsel %vm61, %v47, 0
  %v165 = vsel %vm61, %v48, 0
  %vm167 = vcmask 1043456
  %v169 = vsel %vm167, %v53, 0
  %171 = vmatprep.subr.mxu0 0.0
  %172 = vmatpush1.msra.mxu0 %v49
  %173 = vmatprep.subr.mxu0 0.0
  %174 = vmatpush1.msra.mxu0 %v50
  %175 = vmatprep.subr.mxu0 0.0
  %176 = vmatpush1.msra.mxu0 %v51
  %177 = vmatprep.subr.mxu0 0.0
  %178 = vmatpush1.msra.mxu0 %v52
  %179 = vmatprep.subr.mxu0 0.0
  %180 = vmatpush1.msra.mxu0 %v169
  %181 = vmatprep.subr.mxu0 0.0
  %182 = vmatpush1.msra.mxu0 0.0
  %183 = vmatprep.subr.mxu0 0.0
  %184 = vmatpush1.msra.mxu0 0.0
  %185 = vmatprep.subr.mxu0 0.0
  %186 = vmatpush1.msra.mxu0 0.0
  %187 = vmatprep.subr.mxu0 0.0
  %188 = vmatpush1.msra.mxu0 0.0
  %189 = vmatprep.subr.mxu0 0.0
  %190 = vmatpush1.msra.mxu0 0.0
  %191 = vmatprep.subr.mxu0 0.0
  %192 = vmatpush1.msra.mxu0 0.0
  %193 = vmatprep.subr.mxu0 0.0
  %194 = vmatpush1.msra.mxu0 0.0
  %195 = vmatprep.subr.mxu0 0.0
  %196 = vmatpush1.msra.mxu0 0.0
  %197 = vmatprep.subr.mxu0 0.0
  %198 = vmatpush1.msra.mxu0 0.0
  %199 = vmatprep.subr.mxu0 0.0
  %200 = vmatpush1.msra.mxu0 0.0
  %201 = vmatprep.subr.mxu0 0.0
  %202 = vmatpush1.msra.mxu0 0.0
  %203 = vmatprep.subr.mxu0 0.0
  %204 = vmatpush1.msra.mxu0 0.0
  %205 = vmatprep.subr.mxu0 0.0
  %206 = vmatpush1.msra.mxu0 0.0
  %207 = vmatprep.subr.mxu0 0.0
  %208 = vmatpush1.msra.mxu0 0.0
  %209 = vmatprep.subr.mxu0 0.0
  %210 = vmatpush1.msra.mxu0 0.0
  %211 = vmatprep.subr.mxu0 0.0
  %212 = vmatpush1.msra.mxu0 0.0
  %213 = vmatprep.subr.mxu0 0.0
  %214 = vmatpush1.msra.mxu0 0.0
  %215 = vmatprep.subr.mxu0 0.0
  %216 = vmatpush1.msra.mxu0 0.0
  %217 = vmatprep.subr.mxu0 0.0
  %218 = vmatpush1.msra.mxu0 0.0
  %219 = vmatprep.subr.mxu0 0.0
  %220 = vmatpush1.msra.mxu0 0.0
  %221 = vmatprep.subr.mxu0 0.0
  %222 = vmatpush1.msra.mxu0 0.0
  %223 = vmatprep.subr.mxu0 0.0
  %224 = vmatpush1.msra.mxu0 0.0
  %225 = vmatprep.subr.mxu0 0.0
  %226 = vmatpush1.msra.mxu0 0.0
  %227 = vmatprep.subr.mxu0 0.0
  %228 = vmatpush1.msra.mxu0 0.0
  %229 = vmatprep.subr.mxu0 0.0
  %230 = vmatpush1.msra.mxu0 0.0
  %231 = vmatprep.subr.mxu0 0.0
  %232 = vmatpush1.msra.mxu0 0.0
  %233 = vmatprep.subr.mxu0 0.0
  %234 = vmatpush1.msra.mxu0 0.0
  %235 = vmatprep.mubr.f32.mxu0 0.0
  %236 = vmatmul.mubr.f32.gmra.mrb[0].mxu0 %v63
  %v237 = vpop.f32.mrb[0].mxu0
  %v238 = vadd.f32 %v59, %v237
  %v239 = vpop.f32.mrb[0].mxu0
  %240 = vmatprep.mubr.f32.mxu0 0.0
  %241 = vmatmul.mubr.f32.gmra.mrb[0].mxu0 %v66
  %v242 = vpop.f32.mrb[0].mxu0
  %v243 = vadd.f32 %v59, %v242
  %v244 = vpop.f32.mrb[0].mxu0
  %245 = vmatprep.mubr.f32.mxu0 0.0
  %246 = vmatmul.mubr.f32.gmra.mrb[0].mxu0 %v69
  %v247 = vpop.f32.mrb[0].mxu0
  %v248 = vadd.f32 %v59, %v247
  %v249 = vpop.f32.mrb[0].mxu0
  %250 = vmatprep.mubr.f32.mxu0 0.0
  %251 = vmatmul.mubr.f32.gmra.mrb[0].mxu0 %v72
  %v252 = vpop.f32.mrb[0].mxu0
  %v253 = vadd.f32 %v59, %v252
  %v254 = vpop.f32.mrb[0].mxu0
  %255 = vmatprep.mubr.f32.mxu0 0.0
  %256 = vmatmul.mubr.f32.gmra.mrb[0].mxu0 %v75
  %v257 = vpop.f32.mrb[0].mxu0
  %v258 = vadd.f32 %v59, %v257
  %v259 = vpop.f32.mrb[0].mxu0
  %260 = vmatprep.mubr.f32.mxu0 0.0
  %261 = vmatmul.mubr.f32.gmra.mrb[0].mxu0 %v78
  %v262 = vpop.f32.mrb[0].mxu0
  %v263 = vadd.f32 %v59, %v262
  %v264 = vpop.f32.mrb[0].mxu0
  %265 = vmatprep.mubr.f32.mxu0 0.0
  %266 = vmatmul.mubr.f32.gmra.mrb[0].mxu0 %v81
  %v267 = vpop.f32.mrb[0].mxu0
  %v268 = vadd.f32 %v59, %v267
  %v269 = vpop.f32.mrb[0].mxu0
  %270 = vmatprep.mubr.f32.mxu0 0.0
  %271 = vmatmul.mubr.f32.gmra.mrb[0].mxu0 %v84
  %v272 = vpop.f32.mrb[0].mxu0
  %v273 = vadd.f32 %v59, %v272
  %v274 = vpop.f32.mrb[0].mxu0
  %275 = vmatprep.mubr.f32.mxu0 0.0
  %276 = vmatmul.mubr.f32.gmra.mrb[0].mxu0 %v87
  %v277 = vpop.f32.mrb[0].mxu0
  %v278 = vadd.f32 %v59, %v277
  %v279 = vpop.f32.mrb[0].mxu0
  %280 = vmatprep.mubr.f32.mxu0 0.0
  %281 = vmatmul.mubr.f32.gmra.mrb[0].mxu0 %v90
  %v282 = vpop.f32.mrb[0].mxu0
  %v283 = vadd.f32 %v59, %v282
  %v284 = vpop.f32.mrb[0].mxu0
  %285 = vmatprep.mubr.f32.mxu0 0.0
  %286 = vmatmul.mubr.f32.gmra.mrb[0].mxu0 %v93
  %v287 = vpop.f32.mrb[0].mxu0
  %v288 = vadd.f32 %v59, %v287
  %v289 = vpop.f32.mrb[0].mxu0
  %290 = vmatprep.mubr.f32.mxu0 0.0
  %291 = vmatmul.mubr.f32.gmra.mrb[0].mxu0 %v96
  %v292 = vpop.f32.mrb[0].mxu0
  %v293 = vadd.f32 %v59, %v292
  %v294 = vpop.f32.mrb[0].mxu0
  %295 = vmatprep.mubr.f32.mxu0 0.0
  %296 = vmatmul.mubr.f32.gmra.mrb[0].mxu0 %v99
  %v297 = vpop.f32.mrb[0].mxu0
  %v298 = vadd.f32 %v59, %v297
  %v299 = vpop.f32.mrb[0].mxu0
  %300 = vmatprep.mubr.f32.mxu0 0.0
  %301 = vmatmul.mubr.f32.gmra.mrb[0].mxu0 %v102
  %v302 = vpop.f32.mrb[0].mxu0
  %v303 = vadd.f32 %v59, %v302
  %v304 = vpop.f32.mrb[0].mxu0
  %305 = vmatprep.mubr.f32.mxu0 0.0
  %306 = vmatmul.mubr.f32.gmra.mrb[0].mxu0 %v105
  %v307 = vpop.f32.mrb[0].mxu0
  %v308 = vadd.f32 %v59, %v307
  %v309 = vpop.f32.mrb[0].mxu0
  %310 = vmatprep.mubr.f32.mxu0 0.0
  %311 = vmatmul.mubr.f32.gmra.mrb[0].mxu0 %v108
  %v312 = vpop.f32.mrb[0].mxu0
  %v313 = vadd.f32 %v59, %v312
  %v314 = vpop.f32.mrb[0].mxu0
  %315 = vmatprep.mubr.f32.mxu0 0.0
  %316 = vmatmul.mubr.f32.gmra.mrb[0].mxu0 %v111
  %v317 = vpop.f32.mrb[0].mxu0
  %v318 = vadd.f32 %v59, %v317
  %v319 = vpop.f32.mrb[0].mxu0
  %320 = vmatprep.mubr.f32.mxu0 0.0
  %321 = vmatmul.mubr.f32.gmra.mrb[0].mxu0 %v114
  %v322 = vpop.f32.mrb[0].mxu0
  %v323 = vadd.f32 %v59, %v322
  %v324 = vpop.f32.mrb[0].mxu0
  %325 = vmatprep.mubr.f32.mxu0 0.0
  %326 = vmatmul.mubr.f32.gmra.mrb[0].mxu0 %v117
  %v327 = vpop.f32.mrb[0].mxu0
  %v328 = vadd.f32 %v59, %v327
  %v329 = vpop.f32.mrb[0].mxu0
  %330 = vmatprep.mubr.f32.mxu0 0.0
  %331 = vmatmul.mubr.f32.gmra.mrb[0].mxu0 %v120
  %v332 = vpop.f32.mrb[0].mxu0
  %v333 = vadd.f32 %v59, %v332
  %v334 = vpop.f32.mrb[0].mxu0
  %335 = vmatprep.mubr.f32.mxu0 0.0
  %336 = vmatmul.mubr.f32.gmra.mrb[0].mxu0 %v123
  %v337 = vpop.f32.mrb[0].mxu0
  %v338 = vadd.f32 %v59, %v337
  %v339 = vpop.f32.mrb[0].mxu0
  %340 = vmatprep.mubr.f32.mxu0 0.0
  %341 = vmatmul.mubr.f32.gmra.mrb[0].mxu0 %v126
  %v342 = vpop.f32.mrb[0].mxu0
  %v343 = vadd.f32 %v59, %v342
  %v344 = vpop.f32.mrb[0].mxu0
  %345 = vmatprep.mubr.f32.mxu0 0.0
  %346 = vmatmul.mubr.f32.gmra.mrb[0].mxu0 %v129
  %v347 = vpop.f32.mrb[0].mxu0
  %v348 = vadd.f32 %v59, %v347
  %v349 = vpop.f32.mrb[0].mxu0
  %350 = vmatprep.mubr.f32.mxu0 0.0
  %351 = vmatmul.mubr.f32.gmra.mrb[0].mxu0 %v132
  %v352 = vpop.f32.mrb[0].mxu0
  %v353 = vadd.f32 %v59, %v352
  %v354 = vpop.f32.mrb[0].mxu0
  %355 = vmatprep.mubr.f32.mxu0 0.0
  %356 = vmatmul.mubr.f32.gmra.mrb[0].mxu0 %v135
  %v357 = vpop.f32.mrb[0].mxu0
  %v358 = vadd.f32 %v59, %v357
  %v359 = vpop.f32.mrb[0].mxu0
  %360 = vmatprep.mubr.f32.mxu0 0.0
  %361 = vmatmul.mubr.f32.gmra.mrb[0].mxu0 %v138
  %v362 = vpop.f32.mrb[0].mxu0
  %v363 = vadd.f32 %v59, %v362
  %v364 = vpop.f32.mrb[0].mxu0
  %365 = vmatprep.mubr.f32.mxu0 0.0
  %366 = vmatmul.mubr.f32.gmra.mrb[0].mxu0 %v141
  %v367 = vpop.f32.mrb[0].mxu0
  %v368 = vadd.f32 %v59, %v367
  %v369 = vpop.f32.mrb[0].mxu0
  %370 = vmatprep.mubr.f32.mxu0 0.0
  %371 = vmatmul.mubr.f32.gmra.mrb[0].mxu0 %v144
  %v372 = vpop.f32.mrb[0].mxu0
  %v373 = vadd.f32 %v59, %v372
  %v374 = vpop.f32.mrb[0].mxu0
  %375 = vmatprep.mubr.f32.mxu0 0.0
  %376 = vmatmul.mubr.f32.gmra.mrb[0].mxu0 %v147
  %v377 = vpop.f32.mrb[0].mxu0
  %v378 = vadd.f32 %v59, %v377
  %v379 = vpop.f32.mrb[0].mxu0
  %380 = vmatprep.mubr.f32.mxu0 0.0
  %381 = vmatmul.mubr.f32.gmra.mrb[0].mxu0 %v150
  %v382 = vpop.f32.mrb[0].mxu0
  %v383 = vadd.f32 %v59, %v382
  %v384 = vpop.f32.mrb[0].mxu0
  %385 = vmatprep.mubr.f32.mxu0 0.0
  %386 = vmatmul.mubr.f32.gmra.mrb[0].mxu0 %v153
  %v387 = vpop.f32.mrb[0].mxu0
  %v388 = vadd.f32 %v59, %v387
  %v389 = vpop.f32.mrb[0].mxu0
  %390 = vmatprep.mubr.f32.mxu0 0.0
  %391 = vmatmul.mubr.f32.gmra.mrb[0].mxu0 %v156
  %v392 = vpop.f32.mrb[0].mxu0
  %v393 = vadd.f32 %v59, %v392
  %v394 = vpop.f32.mrb[0].mxu0
  %395 = vmatprep.mubr.f32.mxu0 0.0
  %396 = vmatmul.mubr.f32.gmra.mrb[0].mxu0 %v159
  %v397 = vpop.f32.mrb[0].mxu0
  %v398 = vadd.f32 %v59, %v397
  %v399 = vpop.f32.mrb[0].mxu0
  %400 = vmatprep.mubr.f32.mxu0 0.0
  %401 = vmatmul.mubr.f32.gmra.mrb[0].mxu0 %v162
  %v402 = vpop.f32.mrb[0].mxu0
  %v403 = vadd.f32 %v59, %v402
  %v404 = vpop.f32.mrb[0].mxu0
  %405 = vmatprep.mubr.f32.mxu0 0.0
  %406 = vmatmul.mubr.f32.gmra.mrb[0].mxu0 %v165
  %v407 = vpop.f32.mrb[0].mxu0
  %v408 = vadd.f32 %v59, %v407
  %v409 = vpop.f32.mrb[0].mxu0
  %410 = vdwg.mxu0
  %v411 = vmax.f32 %v238, 0.0
  %v412 = vmax.f32 %v243, 0.0
  %v413 = vmax.f32 %v248, 0.0
  %v414 = vmax.f32 %v253, 0.0
  %v415 = vmax.f32 %v258, 0.0
  %v416 = vmax.f32 %v263, 0.0
  %v417 = vmax.f32 %v268, 0.0
  %v418 = vmax.f32 %v273, 0.0
  %v419 = vmax.f32 %v278, 0.0
  %v420 = vmax.f32 %v283, 0.0
  %v421 = vmax.f32 %v288, 0.0
  %v422 = vmax.f32 %v293, 0.0
  %v423 = vmax.f32 %v298, 0.0
  %v424 = vmax.f32 %v303, 0.0
  %v425 = vmax.f32 %v308, 0.0
  %v426 = vmax.f32 %v313, 0.0
  %v427 = vmax.f32 %v318, 0.0
  %v428 = vmax.f32 %v323, 0.0
  %v429 = vmax.f32 %v328, 0.0
  %v430 = vmax.f32 %v333, 0.0
  %v431 = vmax.f32 %v338, 0.0
  %v432 = vmax.f32 %v343, 0.0
  %v433 = vmax.f32 %v348, 0.0
  %v434 = vmax.f32 %v353, 0.0
  %v435 = vmax.f32 %v358, 0.0
  %v436 = vmax.f32 %v363, 0.0
  %v437 = vmax.f32 %v368, 0.0
  %v438 = vmax.f32 %v373, 0.0
  %v439 = vmax.f32 %v378, 0.0
  %v440 = vmax.f32 %v383, 0.0
  %v441 = vmax.f32 %v388, 0.0
  %v442 = vmax.f32 %v393, 0.0
  %v443 = vmax.f32 %v398, 0.0
  %v444 = vmax.f32 %v403, 0.0
  %v445 = vmax.f32 %v408, 0.0
  %vm446 = vcmask 130048
  %447 = vst.msk [vmem:[%s3] sm:$0xff] %vm446, %v411
  %448 = vst.msk [vmem:[%s3 + $0x8] sm:$0xff] %vm446, %v412
  %449 = vst.msk [vmem:[%s3 + $0x10] sm:$0xff] %vm446, %v413
  %450 = vst.msk [vmem:[%s3 + $0x18] sm:$0xff] %vm446, %v414
  %451 = vst.msk [vmem:[%s3 + $0x20] sm:$0xff] %vm446, %v415
  %452 = vst.msk [vmem:[%s3 + $0x28] sm:$0xff] %vm446, %v416
  %453 = vst.msk [vmem:[%s3 + $0x30] sm:$0xff] %vm446, %v417
  %454 = vst.msk [vmem:[%s3 + $0x38] sm:$0xff] %vm446, %v418
  %455 = vst.msk [vmem:[%s3 + $0x40] sm:$0xff] %vm446, %v419
  %456 = vst.msk [vmem:[%s3 + $0x48] sm:$0xff] %vm446, %v420
  %457 = vst.msk [vmem:[%s3 + $0x50] sm:$0xff] %vm446, %v421
  %458 = vst.msk [vmem:[%s3 + $0x58] sm:$0xff] %vm446, %v422
  %459 = vst.msk [vmem:[%s3 + $0x60] sm:$0xff] %vm446, %v423
  %460 = vst.msk [vmem:[%s3 + $0x68] sm:$0xff] %vm446, %v424
  %461 = vst.msk [vmem:[%s3 + $0x70] sm:$0xff] %vm446, %v425
  %462 = vst.msk [vmem:[%s3 + $0x78] sm:$0xff] %vm446, %v426
  %463 = vst.msk [vmem:[%s3 + $0x80] sm:$0xff] %vm446, %v427
  %464 = vst.msk [vmem:[%s3 + $0x88] sm:$0xff] %vm446, %v428
  %465 = vst.msk [vmem:[%s3 + $0x90] sm:$0xff] %vm446, %v429
  %466 = vst.msk [vmem:[%s3 + $0x98] sm:$0xff] %vm446, %v430
  %467 = vst.msk [vmem:[%s3 + $0xa0] sm:$0xff] %vm446, %v431
  %468 = vst.msk [vmem:[%s3 + $0xa8] sm:$0xff] %vm446, %v432
  %469 = vst.msk [vmem:[%s3 + $0xb0] sm:$0xff] %vm446, %v433
  %470 = vst.msk [vmem:[%s3 + $0xb8] sm:$0xff] %vm446, %v434
  %471 = vst.msk [vmem:[%s3 + $0xc0] sm:$0xff] %vm446, %v435
  %472 = vst.msk [vmem:[%s3 + $0xc8] sm:$0xff] %vm446, %v436
  %473 = vst.msk [vmem:[%s3 + $0xd0] sm:$0xff] %vm446, %v437
  %474 = vst.msk [vmem:[%s3 + $0xd8] sm:$0xff] %vm446, %v438
  %475 = vst.msk [vmem:[%s3 + $0xe0] sm:$0xff] %vm446, %v439
  %476 = vst.msk [vmem:[%s3 + $0xe8] sm:$0xff] %vm446, %v440
  %477 = vst.msk [vmem:[%s3 + $0xf0] sm:$0xff] %vm446, %v441
  %478 = vst.msk [vmem:[%s3 + $0xf8] sm:$0xff] %vm446, %v442
  %479 = vst.msk [vmem:[%s3 + $0x100] sm:$0xff] %vm446, %v443
  %480 = vst.msk [vmem:[%s3 + $0x108] sm:$0xff] %vm446, %v444
  %481 = vst.msk [vmem:[%s3 + $0x110] sm:$0xff] %vm446, %v445
  // Predicated region
  $region14: #{cnn_base_forward.2} parent=0 // pred_check
    _
  $region15: #{cnn_base_forward.2} parent=0 // pred_check_branch
    %483 = sbr.rel (0) target = $region17
  $region16: #{cnn_base_forward.2} parent=0 // pred_region
    _
  $region17: #{cnn_base_forward.2} parent=0 // pred_fallthru
    _
  // Predicated region
  $region18: #{cnn_base_forward.2} parent=0 // pred_check
    _
  $region19: #{cnn_base_forward.2} parent=0 // pred_check_branch
    %485 = sbr.rel (0) target = $region21
  $region20: #{cnn_base_forward.2} parent=0 // pred_region
    _
  $region21: #{cnn_base_forward.2} parent=0 // pred_fallthru
    _

// kernel: cnn_base_forward.3
$region0: #{cnn_base_forward.3}
  #allocation0 [shape = 'u32[]', space=smem, size = 0x4, offset = 0x4, fixed_abs, tag = 'smem constant byte address 0x4 - core index']
  #allocation1 [shape = 'u32[144,128]{1,0:T(1,128)}', space=vmem, size = 0x12000, scoped, tag = 'internal scratch']
  %s0 = inlined_call_operand.vmem [shape: f32[2,2240], index: 0, kind: input, shape index: {}]
  %s1 = inlined_call_operand.vmem [shape: f32[2240,32], index: 1, kind: input, shape index: {}]
  %s2 = inlined_call_operand.vmem [shape: f32[1,32], index: 2, kind: input, shape index: {}]
  %s3 = inlined_call_operand.vmem [shape: f32[32,32], index: 3, kind: input, shape index: {}]
  %s4 = inlined_call_operand.vmem [shape: f32[1,32], index: 4, kind: input, shape index: {}]
  %s5 = inlined_call_operand.hbm [shape: f32[2,32], index: 5, kind: output, shape index: {}]
  %s6 = sld [smem:[#allocation0]]
  $region30: #{cnn_base_forward.3} parent=0
    _
  %s8 = ssub.s32 1, %s6
  %s9 = scalar_select 0, %s8, %s6
  $region1: #{cnn_base_forward.3} parent=0
    #allocation2 [shape = 'u8[1024]{0}', space=vmem, size = 0x400, scoped, tag = 'output window, operand 0, single buffered']
    #allocation3 [shape = 's32[1]{0}', space=sflag, size = 0x4, scoped, tag = 'scoped memory for cnn_base_forward.3']
    %10 = vsyncpa [#allocation3], 0
    // Predicated region
    $region2: #{cnn_base_forward.3} parent=1 // pred_check
      _
    $region3: #{cnn_base_forward.3} parent=1 // pred_check_branch
      %12 = sbr.rel (0) target = $region5
    $region4: #{cnn_base_forward.3} parent=1 // pred_region
      _
    $region5: #{cnn_base_forward.3} parent=1 // pred_fallthru
      _
    // Predicated region
    $region6: #{cnn_base_forward.3} parent=1 // pred_check
      _
    $region7: #{cnn_base_forward.3} parent=1 // pred_check_branch
      %14 = sbr.rel (0) target = $region9
    $region8: #{cnn_base_forward.3} parent=1 // pred_region
      _
    $region9: #{cnn_base_forward.3} parent=1 // pred_fallthru
      _
    // Predicated region
    $region10: #{cnn_base_forward.3} parent=1 // pred_check
      _
    $region11: #{cnn_base_forward.3} parent=1 // pred_check_branch
      %16 = sbr.rel (0) target = $region13
    $region12: #{cnn_base_forward.3} parent=1 // pred_region
      _
    $region13: #{cnn_base_forward.3} parent=1 // pred_fallthru
      _
    // Predicated region
    $region14: #{cnn_base_forward.3} parent=1 // pred_check
      _
    $region15: #{cnn_base_forward.3} parent=1 // pred_check_branch
      %18 = sbr.rel (0) target = $region17
    $region16: #{cnn_base_forward.3} parent=1 // pred_region
      _
    $region17: #{cnn_base_forward.3} parent=1 // pred_fallthru
      _
    // Predicated region
    $region18: #{cnn_base_forward.3} parent=1 // pred_check
      _
    $region19: #{cnn_base_forward.3} parent=1 // pred_check_branch
      %20 = sbr.rel (0) target = $region21
    $region20: #{cnn_base_forward.3} parent=1 // pred_region
      _
    $region21: #{cnn_base_forward.3} parent=1 // pred_fallthru
      _
    %v21 = vld [vmem:[%s0] sm:$0xff]
    %v22 = vld [vmem:[%s0 + $0x8] sm:$0xff]
    %v23 = vld [vmem:[%s0 + $0x10] sm:$0xff]
    %v24 = vld [vmem:[%s0 + $0x18] sm:$0xff]
    %v25 = vld [vmem:[%s0 + $0x20] sm:$0xf]
    %v26 = vld [vmem:[%s1] sm:$0xff]
    %v27 = vld [vmem:[%s1 + $0x8] sm:$0xff]
    %v28 = vld [vmem:[%s1 + $0x10] sm:$0xff]
    %v29 = vld [vmem:[%s1 + $0x18] sm:$0xff]
    %v30 = vld [vmem:[%s1 + $0x20] sm:$0xff]
    %v31 = vld [vmem:[%s1 + $0x28] sm:$0xff]
    %v32 = vld [vmem:[%s1 + $0x30] sm:$0xff]
    %v33 = vld [vmem:[%s1 + $0x38] sm:$0xff]
    %v34 = vld [vmem:[%s1 + $0x40] sm:$0xff]
    %v35 = vld [vmem:[%s1 + $0x48] sm:$0xff]
    %v36 = vld [vmem:[%s1 + $0x50] sm:$0xff]
    %v37 = vld [vmem:[%s1 + $0x58] sm:$0xff]
    %v38 = vld [vmem:[%s1 + $0x60] sm:$0xff]
    %v39 = vld [vmem:[%s1 + $0x68] sm:$0xff]
    %v40 = vld [vmem:[%s1 + $0x70] sm:$0xff]
    %v41 = vld [vmem:[%s1 + $0x78] sm:$0xff]
    %v42 = vld [vmem:[%s1 + $0x80] sm:$0xff]
    %v43 = vld [vmem:[%s1 + $0x88] sm:$0xff]
    %v44 = vld [vmem:[%s1 + $0x90] sm:$0xff]
    %v45 = vld [vmem:[%s1 + $0x98] sm:$0xff]
    %v46 = vld [vmem:[%s1 + $0xa0] sm:$0xff]
    %v47 = vld [vmem:[%s1 + $0xa8] sm:$0xff]
    %v48 = vld [vmem:[%s1 + $0xb0] sm:$0xff]
    %v49 = vld [vmem:[%s1 + $0xb8] sm:$0xff]
    %v50 = vld [vmem:[%s1 + $0xc0] sm:$0xff]
    %v51 = vld [vmem:[%s1 + $0xc8] sm:$0xff]
    %v52 = vld [vmem:[%s1 + $0xd0] sm:$0xff]
    %v53 = vld [vmem:[%s1 + $0xd8] sm:$0xff]
    %v54 = vld [vmem:[%s1 + $0xe0] sm:$0xff]
    %v55 = vld [vmem:[%s1 + $0xe8] sm:$0xff]
    %v56 = vld [vmem:[%s1 + $0xf0] sm:$0xff]
    %v57 = vld [vmem:[%s1 + $0xf8] sm:$0xff]
    %v58 = vld [vmem:[%s1 + $0x100] sm:$0xff]
    %v59 = vld [vmem:[%s1 + $0x108] sm:$0xff]
    %v60 = vld [vmem:[%s1 + $0x110] sm:$0xff]
    %v61 = vld [vmem:[%s1 + $0x118] sm:$0xff]
    %v62 = vld [vmem:[%s1 + $0x120] sm:$0xff]
    %v63 = vld [vmem:[%s1 + $0x128] sm:$0xff]
    %v64 = vld [vmem:[%s1 + $0x130] sm:$0xff]
    %v65 = vld [vmem:[%s1 + $0x138] sm:$0xff]
    %v66 = vld [vmem:[%s1 + $0x140] sm:$0xff]
    %v67 = vld [vmem:[%s1 + $0x148] sm:$0xff]
    %v68 = vld [vmem:[%s1 + $0x150] sm:$0xff]
    %v69 = vld [vmem:[%s1 + $0x158] sm:$0xff]
    %v70 = vld [vmem:[%s1 + $0x160] sm:$0xff]
    %v71 = vld [vmem:[%s1 + $0x168] sm:$0xff]
    %v72 = vld [vmem:[%s1 + $0x170] sm:$0xff]
    %v73 = vld [vmem:[%s1 + $0x178] sm:$0xff]
    %v74 = vld [vmem:[%s1 + $0x180] sm:$0xff]
    %v75 = vld [vmem:[%s1 + $0x188] sm:$0xff]
    %v76 = vld [vmem:[%s1 + $0x190] sm:$0xff]
    %v77 = vld [vmem:[%s1 + $0x198] sm:$0xff]
    %v78 = vld [vmem:[%s1 + $0x1a0] sm:$0xff]
    %v79 = vld [vmem:[%s1 + $0x1a8] sm:$0xff]
    %v80 = vld [vmem:[%s1 + $0x1b0] sm:$0xff]
    %v81 = vld [vmem:[%s1 + $0x1b8] sm:$0xff]
    %v82 = vld [vmem:[%s1 + $0x1c0] sm:$0xff]
    %v83 = vld [vmem:[%s1 + $0x1c8] sm:$0xff]
    %v84 = vld [vmem:[%s1 + $0x1d0] sm:$0xff]
    %v85 = vld [vmem:[%s1 + $0x1d8] sm:$0xff]
    %v86 = vld [vmem:[%s1 + $0x1e0] sm:$0xff]
    %v87 = vld [vmem:[%s1 + $0x1e8] sm:$0xff]
    %v88 = vld [vmem:[%s1 + $0x1f0] sm:$0xff]
    %v89 = vld [vmem:[%s1 + $0x1f8] sm:$0xff]
    %v90 = vld [vmem:[%s1 + $0x200] sm:$0xff]
    %v91 = vld [vmem:[%s1 + $0x208] sm:$0xff]
    %v92 = vld [vmem:[%s1 + $0x210] sm:$0xff]
    %v93 = vld [vmem:[%s1 + $0x218] sm:$0xff]
    %v94 = vld [vmem:[%s1 + $0x220] sm:$0xff]
    %v95 = vld [vmem:[%s1 + $0x228] sm:$0xff]
    %v96 = vld [vmem:[%s1 + $0x230] sm:$0xff]
    %v97 = vld [vmem:[%s1 + $0x238] sm:$0xff]
    %v98 = vld [vmem:[%s1 + $0x240] sm:$0xff]
    %v99 = vld [vmem:[%s1 + $0x248] sm:$0xff]
    %v100 = vld [vmem:[%s1 + $0x250] sm:$0xff]
    %v101 = vld [vmem:[%s1 + $0x258] sm:$0xff]
    %v102 = vld [vmem:[%s1 + $0x260] sm:$0xff]
    %v103 = vld [vmem:[%s1 + $0x268] sm:$0xff]
    %v104 = vld [vmem:[%s1 + $0x270] sm:$0xff]
    %v105 = vld [vmem:[%s1 + $0x278] sm:$0xff]
    %v106 = vld [vmem:[%s1 + $0x280] sm:$0xff]
    %v107 = vld [vmem:[%s1 + $0x288] sm:$0xff]
    %v108 = vld [vmem:[%s1 + $0x290] sm:$0xff]
    %v109 = vld [vmem:[%s1 + $0x298] sm:$0xff]
    %v110 = vld [vmem:[%s1 + $0x2a0] sm:$0xff]
    %v111 = vld [vmem:[%s1 + $0x2a8] sm:$0xff]
    %v112 = vld [vmem:[%s1 + $0x2b0] sm:$0xff]
    %v113 = vld [vmem:[%s1 + $0x2b8] sm:$0xff]
    %v114 = vld [vmem:[%s1 + $0x2c0] sm:$0xff]
    %v115 = vld [vmem:[%s1 + $0x2c8] sm:$0xff]
    %v116 = vld [vmem:[%s1 + $0x2d0] sm:$0xff]
    %v117 = vld [vmem:[%s1 + $0x2d8] sm:$0xff]
    %v118 = vld [vmem:[%s1 + $0x2e0] sm:$0xff]
    %v119 = vld [vmem:[%s1 + $0x2e8] sm:$0xff]
    %v120 = vld [vmem:[%s1 + $0x2f0] sm:$0xff]
    %v121 = vld [vmem:[%s1 + $0x2f8] sm:$0xff]
    %v122 = vld [vmem:[%s1 + $0x300] sm:$0xff]
    %v123 = vld [vmem:[%s1 + $0x308] sm:$0xff]
    %v124 = vld [vmem:[%s1 + $0x310] sm:$0xff]
    %v125 = vld [vmem:[%s1 + $0x318] sm:$0xff]
    %v126 = vld [vmem:[%s1 + $0x320] sm:$0xff]
    %v127 = vld [vmem:[%s1 + $0x328] sm:$0xff]
    %v128 = vld [vmem:[%s1 + $0x330] sm:$0xff]
    %v129 = vld [vmem:[%s1 + $0x338] sm:$0xff]
    %v130 = vld [vmem:[%s1 + $0x340] sm:$0xff]
    %v131 = vld [vmem:[%s1 + $0x348] sm:$0xff]
    %v132 = vld [vmem:[%s1 + $0x350] sm:$0xff]
    %v133 = vld [vmem:[%s1 + $0x358] sm:$0xff]
    %v134 = vld [vmem:[%s1 + $0x360] sm:$0xff]
    %v135 = vld [vmem:[%s1 + $0x368] sm:$0xff]
    %v136 = vld [vmem:[%s1 + $0x370] sm:$0xff]
    %v137 = vld [vmem:[%s1 + $0x378] sm:$0xff]
    %v138 = vld [vmem:[%s1 + $0x380] sm:$0xff]
    %v139 = vld [vmem:[%s1 + $0x388] sm:$0xff]
    %v140 = vld [vmem:[%s1 + $0x390] sm:$0xff]
    %v141 = vld [vmem:[%s1 + $0x398] sm:$0xff]
    %v142 = vld [vmem:[%s1 + $0x3a0] sm:$0xff]
    %v143 = vld [vmem:[%s1 + $0x3a8] sm:$0xff]
    %v144 = vld [vmem:[%s1 + $0x3b0] sm:$0xff]
    %v145 = vld [vmem:[%s1 + $0x3b8] sm:$0xff]
    %v146 = vld [vmem:[%s1 + $0x3c0] sm:$0xff]
    %v147 = vld [vmem:[%s1 + $0x3c8] sm:$0xff]
    %v148 = vld [vmem:[%s1 + $0x3d0] sm:$0xff]
    %v149 = vld [vmem:[%s1 + $0x3d8] sm:$0xff]
    %v150 = vld [vmem:[%s1 + $0x3e0] sm:$0xff]
    %v151 = vld [vmem:[%s1 + $0x3e8] sm:$0xff]
    %v152 = vld [vmem:[%s1 + $0x3f0] sm:$0xff]
    %v153 = vld [vmem:[%s1 + $0x3f8] sm:$0xff]
    %v154 = vld [vmem:[%s1 + $0x400] sm:$0xff]
    %v155 = vld [vmem:[%s1 + $0x408] sm:$0xff]
    %v156 = vld [vmem:[%s1 + $0x410] sm:$0xff]
    %v157 = vld [vmem:[%s1 + $0x418] sm:$0xff]
    %v158 = vld [vmem:[%s1 + $0x420] sm:$0xff]
    %v159 = vld [vmem:[%s1 + $0x428] sm:$0xff]
    %v160 = vld [vmem:[%s1 + $0x430] sm:$0xff]
    %v161 = vld [vmem:[%s1 + $0x438] sm:$0xff]
    %v162 = vld [vmem:[%s1 + $0x440] sm:$0xff]
    %v163 = vld [vmem:[%s1 + $0x448] sm:$0xff]
    %v164 = vld [vmem:[%s1 + $0x450] sm:$0xff]
    %v165 = vld [vmem:[%s1 + $0x458] sm:$0xff]
    %v166 = vld [vmem:[%s1 + $0x460] sm:$0xff]
    %v167 = vld [vmem:[%s1 + $0x468] sm:$0xff]
    %v168 = vld [vmem:[%s1 + $0x470] sm:$0xff]
    %v169 = vld [vmem:[%s1 + $0x478] sm:$0xff]
    %v170 = vld [vmem:[%s1 + $0x480] sm:$0xff]
    %v171 = vld [vmem:[%s1 + $0x488] sm:$0xff]
    %v172 = vld [vmem:[%s1 + $0x490] sm:$0xff]
    %v173 = vld [vmem:[%s1 + $0x498] sm:$0xff]
    %v174 = vld [vmem:[%s1 + $0x4a0] sm:$0xff]
    %v175 = vld [vmem:[%s1 + $0x4a8] sm:$0xff]
    %v176 = vld [vmem:[%s1 + $0x4b0] sm:$0xff]
    %v177 = vld [vmem:[%s1 + $0x4b8] sm:$0xff]
    %v178 = vld [vmem:[%s1 + $0x4c0] sm:$0xff]
    %v179 = vld [vmem:[%s1 + $0x4c8] sm:$0xff]
    %v180 = vld [vmem:[%s1 + $0x4d0] sm:$0xff]
    %v181 = vld [vmem:[%s1 + $0x4d8] sm:$0xff]
    %v182 = vld [vmem:[%s1 + $0x4e0] sm:$0xff]
    %v183 = vld [vmem:[%s1 + $0x4e8] sm:$0xff]
    %v184 = vld [vmem:[%s1 + $0x4f0] sm:$0xff]
    %v185 = vld [vmem:[%s1 + $0x4f8] sm:$0xff]
    %v186 = vld [vmem:[%s1 + $0x500] sm:$0xff]
    %v187 = vld [vmem:[%s1 + $0x508] sm:$0xff]
    %v188 = vld [vmem:[%s1 + $0x510] sm:$0xff]
    %v189 = vld [vmem:[%s1 + $0x518] sm:$0xff]
    %v190 = vld [vmem:[%s1 + $0x520] sm:$0xff]
    %v191 = vld [vmem:[%s1 + $0x528] sm:$0xff]
    %v192 = vld [vmem:[%s1 + $0x530] sm:$0xff]
    %v193 = vld [vmem:[%s1 + $0x538] sm:$0xff]
    %v194 = vld [vmem:[%s1 + $0x540] sm:$0xff]
    %v195 = vld [vmem:[%s1 + $0x548] sm:$0xff]
    %v196 = vld [vmem:[%s1 + $0x550] sm:$0xff]
    %v197 = vld [vmem:[%s1 + $0x558] sm:$0xff]
    %v198 = vld [vmem:[%s1 + $0x560] sm:$0xff]
    %v199 = vld [vmem:[%s1 + $0x568] sm:$0xff]
    %v200 = vld [vmem:[%s1 + $0x570] sm:$0xff]
    %v201 = vld [vmem:[%s1 + $0x578] sm:$0xff]
    %v202 = vld [vmem:[%s1 + $0x580] sm:$0xff]
    %v203 = vld [vmem:[%s1 + $0x588] sm:$0xff]
    %v204 = vld [vmem:[%s1 + $0x590] sm:$0xff]
    %v205 = vld [vmem:[%s1 + $0x598] sm:$0xff]
    %v206 = vld [vmem:[%s1 + $0x5a0] sm:$0xff]
    %v207 = vld [vmem:[%s1 + $0x5a8] sm:$0xff]
    %v208 = vld [vmem:[%s1 + $0x5b0] sm:$0xff]
    %v209 = vld [vmem:[%s1 + $0x5b8] sm:$0xff]
    %v210 = vld [vmem:[%s1 + $0x5c0] sm:$0xff]
    %v211 = vld [vmem:[%s1 + $0x5c8] sm:$0xff]
    %v212 = vld [vmem:[%s1 + $0x5d0] sm:$0xff]
    %v213 = vld [vmem:[%s1 + $0x5d8] sm:$0xff]
    %v214 = vld [vmem:[%s1 + $0x5e0] sm:$0xff]
    %v215 = vld [vmem:[%s1 + $0x5e8] sm:$0xff]
    %v216 = vld [vmem:[%s1 + $0x5f0] sm:$0xff]
    %v217 = vld [vmem:[%s1 + $0x5f8] sm:$0xff]
    %v218 = vld [vmem:[%s1 + $0x600] sm:$0xff]
    %v219 = vld [vmem:[%s1 + $0x608] sm:$0xff]
    %v220 = vld [vmem:[%s1 + $0x610] sm:$0xff]
    %v221 = vld [vmem:[%s1 + $0x618] sm:$0xff]
    %v222 = vld [vmem:[%s1 + $0x620] sm:$0xff]
    %v223 = vld [vmem:[%s1 + $0x628] sm:$0xff]
    %v224 = vld [vmem:[%s1 + $0x630] sm:$0xff]
    %v225 = vld [vmem:[%s1 + $0x638] sm:$0xff]
    %v226 = vld [vmem:[%s1 + $0x640] sm:$0xff]
    %v227 = vld [vmem:[%s1 + $0x648] sm:$0xff]
    %v228 = vld [vmem:[%s1 + $0x650] sm:$0xff]
    %v229 = vld [vmem:[%s1 + $0x658] sm:$0xff]
    %v230 = vld [vmem:[%s1 + $0x660] sm:$0xff]
    %v231 = vld [vmem:[%s1 + $0x668] sm:$0xff]
    %v232 = vld [vmem:[%s1 + $0x670] sm:$0xff]
    %v233 = vld [vmem:[%s1 + $0x678] sm:$0xff]
    %v234 = vld [vmem:[%s1 + $0x680] sm:$0xff]
    %v235 = vld [vmem:[%s1 + $0x688] sm:$0xff]
    %v236 = vld [vmem:[%s1 + $0x690] sm:$0xff]
    %v237 = vld [vmem:[%s1 + $0x698] sm:$0xff]
    %v238 = vld [vmem:[%s1 + $0x6a0] sm:$0xff]
    %v239 = vld [vmem:[%s1 + $0x6a8] sm:$0xff]
    %v240 = vld [vmem:[%s1 + $0x6b0] sm:$0xff]
    %v241 = vld [vmem:[%s1 + $0x6b8] sm:$0xff]
    %v242 = vld [vmem:[%s1 + $0x6c0] sm:$0xff]
    %v243 = vld [vmem:[%s1 + $0x6c8] sm:$0xff]
    %v244 = vld [vmem:[%s1 + $0x6d0] sm:$0xff]
    %v245 = vld [vmem:[%s1 + $0x6d8] sm:$0xff]
    %v246 = vld [vmem:[%s1 + $0x6e0] sm:$0xff]
    %v247 = vld [vmem:[%s1 + $0x6e8] sm:$0xff]
    %v248 = vld [vmem:[%s1 + $0x6f0] sm:$0xff]
    %v249 = vld [vmem:[%s1 + $0x6f8] sm:$0xff]
    %v250 = vld [vmem:[%s1 + $0x700] sm:$0xff]
    %v251 = vld [vmem:[%s1 + $0x708] sm:$0xff]
    %v252 = vld [vmem:[%s1 + $0x710] sm:$0xff]
    %v253 = vld [vmem:[%s1 + $0x718] sm:$0xff]
    %v254 = vld [vmem:[%s1 + $0x720] sm:$0xff]
    %v255 = vld [vmem:[%s1 + $0x728] sm:$0xff]
    %v256 = vld [vmem:[%s1 + $0x730] sm:$0xff]
    %v257 = vld [vmem:[%s1 + $0x738] sm:$0xff]
    %v258 = vld [vmem:[%s1 + $0x740] sm:$0xff]
    %v259 = vld [vmem:[%s1 + $0x748] sm:$0xff]
    %v260 = vld [vmem:[%s1 + $0x750] sm:$0xff]
    %v261 = vld [vmem:[%s1 + $0x758] sm:$0xff]
    %v262 = vld [vmem:[%s1 + $0x760] sm:$0xff]
    %v263 = vld [vmem:[%s1 + $0x768] sm:$0xff]
    %v264 = vld [vmem:[%s1 + $0x770] sm:$0xff]
    %v265 = vld [vmem:[%s1 + $0x778] sm:$0xff]
    %v266 = vld [vmem:[%s1 + $0x780] sm:$0xff]
    %v267 = vld [vmem:[%s1 + $0x788] sm:$0xff]
    %v268 = vld [vmem:[%s1 + $0x790] sm:$0xff]
    %v269 = vld [vmem:[%s1 + $0x798] sm:$0xff]
    %v270 = vld [vmem:[%s1 + $0x7a0] sm:$0xff]
    %v271 = vld [vmem:[%s1 + $0x7a8] sm:$0xff]
    %v272 = vld [vmem:[%s1 + $0x7b0] sm:$0xff]
    %v273 = vld [vmem:[%s1 + $0x7b8] sm:$0xff]
    %v274 = vld [vmem:[%s1 + $0x7c0] sm:$0xff]
    %v275 = vld [vmem:[%s1 + $0x7c8] sm:$0xff]
    %v276 = vld [vmem:[%s1 + $0x7d0] sm:$0xff]
    %v277 = vld [vmem:[%s1 + $0x7d8] sm:$0xff]
    %v278 = vld [vmem:[%s1 + $0x7e0] sm:$0xff]
    %v279 = vld [vmem:[%s1 + $0x7e8] sm:$0xff]
    %v280 = vld [vmem:[%s1 + $0x7f0] sm:$0xff]
    %v281 = vld [vmem:[%s1 + $0x7f8] sm:$0xff]
    %v282 = vld [vmem:[%s1 + $0x800] sm:$0xff]
    %v283 = vld [vmem:[%s1 + $0x808] sm:$0xff]
    %v284 = vld [vmem:[%s1 + $0x810] sm:$0xff]
    %v285 = vld [vmem:[%s1 + $0x818] sm:$0xff]
    %v286 = vld [vmem:[%s1 + $0x820] sm:$0xff]
    %v287 = vld [vmem:[%s1 + $0x828] sm:$0xff]
    %v288 = vld [vmem:[%s1 + $0x830] sm:$0xff]
    %v289 = vld [vmem:[%s1 + $0x838] sm:$0xff]
    %v290 = vld [vmem:[%s1 + $0x840] sm:$0xff]
    %v291 = vld [vmem:[%s1 + $0x848] sm:$0xff]
    %v292 = vld [vmem:[%s1 + $0x850] sm:$0xff]
    %v293 = vld [vmem:[%s1 + $0x858] sm:$0xff]
    %v294 = vld [vmem:[%s1 + $0x860] sm:$0xff]
    %v295 = vld [vmem:[%s1 + $0x868] sm:$0xff]
    %v296 = vld [vmem:[%s1 + $0x870] sm:$0xff]
    %v297 = vld [vmem:[%s1 + $0x878] sm:$0xff]
    %v298 = vld [vmem:[%s1 + $0x880] sm:$0xff]
    %v299 = vld [vmem:[%s1 + $0x888] sm:$0xff]
    %v300 = vld [vmem:[%s1 + $0x890] sm:$0xff]
    %v301 = vld [vmem:[%s1 + $0x898] sm:$0xff]
    %v302 = vld [vmem:[%s1 + $0x8a0] sm:$0xff]
    %v303 = vld [vmem:[%s1 + $0x8a8] sm:$0xff]
    %v304 = vld [vmem:[%s1 + $0x8b0] sm:$0xff]
    %v305 = vld [vmem:[%s1 + $0x8b8] sm:$0xff]
    %v306 = vld [vmem:[%s2] sm:$0x1]
    %v308 = vlaneseq
    %v309 = vshrl.u32 %v308, 7
    %v310 = vsub.s32 0, %v309
    %v311 = vrot.slane %v306, %v310
    %v318 = vcombine.high %v21, %v21
    %v320 = vunpack.c.l.s4 1983009808
    %v321 = vunpack.c.0.s8 %v320
    %v322 = vlaneseq
    %v323 = vshrl.u32 %v322, 7
    %v324 = vsub.s32 %v321, %v323
    %v325 = vrot.slane %v21, %v324
    %v327 = vunpack.c.l.s4 1983009808
    %v328 = vunpack.c.0.s8 %v327
    %v329 = vlaneseq
    %v330 = vshrl.u32 %v329, 7
    %v331 = vsub.s32 %v328, %v330
    %v332 = vrot.slane %v318, %v331
    %v333 = vcombine.high %v325, %v325
    %v334 = vcombine.high %v332, %v332
    %v335 = vcombine.high %v22, %v22
    %v337 = vunpack.c.l.s4 1983009808
    %v338 = vunpack.c.0.s8 %v337
    %v339 = vlaneseq
    %v340 = vshrl.u32 %v339, 7
    %v341 = vsub.s32 %v338, %v340
    %v342 = vrot.slane %v22, %v341
    %v344 = vunpack.c.l.s4 1983009808
    %v345 = vunpack.c.0.s8 %v344
    %v346 = vlaneseq
    %v347 = vshrl.u32 %v346, 7
    %v348 = vsub.s32 %v345, %v347
    %v349 = vrot.slane %v335, %v348
    %v350 = vcombine.high %v342, %v342
    %v351 = vcombine.high %v349, %v349
    %v352 = vcombine.high %v23, %v23
    %v354 = vunpack.c.l.s4 1983009808
    %v355 = vunpack.c.0.s8 %v354
    %v356 = vlaneseq
    %v357 = vshrl.u32 %v356, 7
    %v358 = vsub.s32 %v355, %v357
    %v359 = vrot.slane %v23, %v358
    %v361 = vunpack.c.l.s4 1983009808
    %v362 = vunpack.c.0.s8 %v361
    %v363 = vlaneseq
    %v364 = vshrl.u32 %v363, 7
    %v365 = vsub.s32 %v362, %v364
    %v366 = vrot.slane %v352, %v365
    %v367 = vcombine.high %v359, %v359
    %v368 = vcombine.high %v366, %v366
    %v369 = vcombine.high %v24, %v24
    %v371 = vunpack.c.l.s4 1983009808
    %v372 = vunpack.c.0.s8 %v371
    %v373 = vlaneseq
    %v374 = vshrl.u32 %v373, 7
    %v375 = vsub.s32 %v372, %v374
    %v376 = vrot.slane %v24, %v375
    %v378 = vunpack.c.l.s4 1983009808
    %v379 = vunpack.c.0.s8 %v378
    %v380 = vlaneseq
    %v381 = vshrl.u32 %v380, 7
    %v382 = vsub.s32 %v379, %v381
    %v383 = vrot.slane %v369, %v382
    %v384 = vcombine.high %v376, %v376
    %v385 = vcombine.high %v383, %v383
    %v387 = vunpack.c.l.s4 1983009808
    %v388 = vunpack.c.0.s8 %v387
    %v389 = vlaneseq
    %v390 = vshrl.u32 %v389, 7
    %v391 = vsub.s32 %v388, %v390
    %v392 = vrot.slane %v25, %v391
    %v393 = vcombine.high %v392, %v392
    %vm411 = vcmask 523264
    %v412 = vsel %vm411, %v393, 0
    %414 = vmatprep.subr.mxu0 0.0
    %415 = vmatpush1.msra.mxu0 %v26
    %416 = vmatprep.subr.mxu0 0.0
    %417 = vmatpush1.msra.mxu0 %v27
    %418 = vmatprep.subr.mxu0 0.0
    %419 = vmatpush1.msra.mxu0 %v28
    %420 = vmatprep.subr.mxu0 0.0
    %421 = vmatpush1.msra.mxu0 %v29
    %422 = vmatprep.subr.mxu0 0.0
    %423 = vmatpush1.msra.mxu0 %v30
    %424 = vmatprep.subr.mxu0 0.0
    %425 = vmatpush1.msra.mxu0 %v31
    %426 = vmatprep.subr.mxu0 0.0
    %427 = vmatpush1.msra.mxu0 %v32
    %428 = vmatprep.subr.mxu0 0.0
    %429 = vmatpush1.msra.mxu0 %v33
    %430 = vmatprep.subr.mxu0 0.0
    %431 = vmatpush1.msra.mxu0 %v34
    %432 = vmatprep.subr.mxu0 0.0
    %433 = vmatpush1.msra.mxu0 %v35
    %434 = vmatprep.subr.mxu0 0.0
    %435 = vmatpush1.msra.mxu0 %v36
    %436 = vmatprep.subr.mxu0 0.0
    %437 = vmatpush1.msra.mxu0 %v37
    %438 = vmatprep.subr.mxu0 0.0
    %439 = vmatpush1.msra.mxu0 %v38
    %440 = vmatprep.subr.mxu0 0.0
    %441 = vmatpush1.msra.mxu0 %v39
    %442 = vmatprep.subr.mxu0 0.0
    %443 = vmatpush1.msra.mxu0 %v40
    %444 = vmatprep.subr.mxu0 0.0
    %445 = vmatpush1.msra.mxu0 %v41
    %446 = vmatprep.subr.mxu0 0.0
    %447 = vmatpush1.msra.mxu0 %v42
    %448 = vmatprep.subr.mxu0 0.0
    %449 = vmatpush1.msra.mxu0 %v43
    %450 = vmatprep.subr.mxu0 0.0
    %451 = vmatpush1.msra.mxu0 %v44
    %452 = vmatprep.subr.mxu0 0.0
    %453 = vmatpush1.msra.mxu0 %v45
    %454 = vmatprep.subr.mxu0 0.0
    %455 = vmatpush1.msra.mxu0 %v46
    %456 = vmatprep.subr.mxu0 0.0
    %457 = vmatpush1.msra.mxu0 %v47
    %458 = vmatprep.subr.mxu0 0.0
    %459 = vmatpush1.msra.mxu0 %v48
    %460 = vmatprep.subr.mxu0 0.0
    %461 = vmatpush1.msra.mxu0 %v49
    %462 = vmatprep.subr.mxu0 0.0
    %463 = vmatpush1.msra.mxu0 %v50
    %464 = vmatprep.subr.mxu0 0.0
    %465 = vmatpush1.msra.mxu0 %v51
    %466 = vmatprep.subr.mxu0 0.0
    %467 = vmatpush1.msra.mxu0 %v52
    %468 = vmatprep.subr.mxu0 0.0
    %469 = vmatpush1.msra.mxu0 %v53
    %470 = vmatprep.subr.mxu0 0.0
    %471 = vmatpush1.msra.mxu0 %v54
    %472 = vmatprep.subr.mxu0 0.0
    %473 = vmatpush1.msra.mxu0 %v55
    %474 = vmatprep.subr.mxu0 0.0
    %475 = vmatpush1.msra.mxu0 %v56
    %476 = vmatprep.subr.mxu0 0.0
    %477 = vmatpush1.msra.mxu0 %v57
    %478 = vmatprep.mubr.f32.mxu0 %v333
    %479 = vmatmul.mubr.f32.gmra.mrb[0].mxu0 %v325
    %v480 = vpop.f32.mrb[0].mxu0
    %v481 = vadd.f32 %v311, %v480
    %v482 = vpop.f32.mrb[0].mxu0
    %483 = vdwg.mxu0
    %484 = vmatprep.subr.mxu0 0.0
    %485 = vmatpush1.msra.mxu0 %v58
    %486 = vmatprep.subr.mxu0 0.0
    %487 = vmatpush1.msra.mxu0 %v59
    %488 = vmatprep.subr.mxu0 0.0
    %489 = vmatpush1.msra.mxu0 %v60
    %490 = vmatprep.subr.mxu0 0.0
    %491 = vmatpush1.msra.mxu0 %v61
    %492 = vmatprep.subr.mxu0 0.0
    %493 = vmatpush1.msra.mxu0 %v62
    %494 = vmatprep.subr.mxu0 0.0
    %495 = vmatpush1.msra.mxu0 %v63
    %496 = vmatprep.subr.mxu0 0.0
    %497 = vmatpush1.msra.mxu0 %v64
    %498 = vmatprep.subr.mxu0 0.0
    %499 = vmatpush1.msra.mxu0 %v65
    %500 = vmatprep.subr.mxu0 0.0
    %501 = vmatpush1.msra.mxu0 %v66
    %502 = vmatprep.subr.mxu0 0.0
    %503 = vmatpush1.msra.mxu0 %v67
    %504 = vmatprep.subr.mxu0 0.0
    %505 = vmatpush1.msra.mxu0 %v68
    %506 = vmatprep.subr.mxu0 0.0
    %507 = vmatpush1.msra.mxu0 %v69
    %508 = vmatprep.subr.mxu0 0.0
    %509 = vmatpush1.msra.mxu0 %v70
    %510 = vmatprep.subr.mxu0 0.0
    %511 = vmatpush1.msra.mxu0 %v71
    %512 = vmatprep.subr.mxu0 0.0
    %513 = vmatpush1.msra.mxu0 %v72
    %514 = vmatprep.subr.mxu0 0.0
    %515 = vmatpush1.msra.mxu0 %v73
    %516 = vmatprep.subr.mxu0 0.0
    %517 = vmatpush1.msra.mxu0 %v74
    %518 = vmatprep.subr.mxu0 0.0
    %519 = vmatpush1.msra.mxu0 %v75
    %520 = vmatprep.subr.mxu0 0.0
    %521 = vmatpush1.msra.mxu0 %v76
    %522 = vmatprep.subr.mxu0 0.0
    %523 = vmatpush1.msra.mxu0 %v77
    %524 = vmatprep.subr.mxu0 0.0
    %525 = vmatpush1.msra.mxu0 %v78
    %526 = vmatprep.subr.mxu0 0.0
    %527 = vmatpush1.msra.mxu0 %v79
    %528 = vmatprep.subr.mxu0 0.0
    %529 = vmatpush1.msra.mxu0 %v80
    %530 = vmatprep.subr.mxu0 0.0
    %531 = vmatpush1.msra.mxu0 %v81
    %532 = vmatprep.subr.mxu0 0.0
    %533 = vmatpush1.msra.mxu0 %v82
    %534 = vmatprep.subr.mxu0 0.0
    %535 = vmatpush1.msra.mxu0 %v83
    %536 = vmatprep.subr.mxu0 0.0
    %537 = vmatpush1.msra.mxu0 %v84
    %538 = vmatprep.subr.mxu0 0.0
    %539 = vmatpush1.msra.mxu0 %v85
    %540 = vmatprep.subr.mxu0 0.0
    %541 = vmatpush1.msra.mxu0 %v86
    %542 = vmatprep.subr.mxu0 0.0
    %543 = vmatpush1.msra.mxu0 %v87
    %544 = vmatprep.subr.mxu0 0.0
    %545 = vmatpush1.msra.mxu0 %v88
    %546 = vmatprep.subr.mxu0 0.0
    %547 = vmatpush1.msra.mxu0 %v89
    %548 = vmatprep.mubr.f32.mxu0 %v334
    %549 = vmatmul.mubr.f32.gmra.mrb[0].mxu0 %v332
    %v550 = vpop.f32.mrb[0].mxu0
    %v551 = vadd.f32 %v481, %v550
    %v552 = vpop.f32.mrb[0].mxu0
    %553 = vdwg.mxu0
    %554 = vmatprep.subr.mxu0 0.0
    %555 = vmatpush1.msra.mxu0 %v90
    %556 = vmatprep.subr.mxu0 0.0
    %557 = vmatpush1.msra.mxu0 %v91
    %558 = vmatprep.subr.mxu0 0.0
    %559 = vmatpush1.msra.mxu0 %v92
    %560 = vmatprep.subr.mxu0 0.0
    %561 = vmatpush1.msra.mxu0 %v93
    %562 = vmatprep.subr.mxu0 0.0
    %563 = vmatpush1.msra.mxu0 %v94
    %564 = vmatprep.subr.mxu0 0.0
    %565 = vmatpush1.msra.mxu0 %v95
    %566 = vmatprep.subr.mxu0 0.0
    %567 = vmatpush1.msra.mxu0 %v96
    %568 = vmatprep.subr.mxu0 0.0
    %569 = vmatpush1.msra.mxu0 %v97
    %570 = vmatprep.subr.mxu0 0.0
    %571 = vmatpush1.msra.mxu0 %v98
    %572 = vmatprep.subr.mxu0 0.0
    %573 = vmatpush1.msra.mxu0 %v99
    %574 = vmatprep.subr.mxu0 0.0
    %575 = vmatpush1.msra.mxu0 %v100
    %576 = vmatprep.subr.mxu0 0.0
    %577 = vmatpush1.msra.mxu0 %v101
    %578 = vmatprep.subr.mxu0 0.0
    %579 = vmatpush1.msra.mxu0 %v102
    %580 = vmatprep.subr.mxu0 0.0
    %581 = vmatpush1.msra.mxu0 %v103
    %582 = vmatprep.subr.mxu0 0.0
    %583 = vmatpush1.msra.mxu0 %v104
    %584 = vmatprep.subr.mxu0 0.0
    %585 = vmatpush1.msra.mxu0 %v105
    %586 = vmatprep.subr.mxu0 0.0
    %587 = vmatpush1.msra.mxu0 %v106
    %588 = vmatprep.subr.mxu0 0.0
    %589 = vmatpush1.msra.mxu0 %v107
    %590 = vmatprep.subr.mxu0 0.0
    %591 = vmatpush1.msra.mxu0 %v108
    %592 = vmatprep.subr.mxu0 0.0
    %593 = vmatpush1.msra.mxu0 %v109
    %594 = vmatprep.subr.mxu0 0.0
    %595 = vmatpush1.msra.mxu0 %v110
    %596 = vmatprep.subr.mxu0 0.0
    %597 = vmatpush1.msra.mxu0 %v111
    %598 = vmatprep.subr.mxu0 0.0
    %599 = vmatpush1.msra.mxu0 %v112
    %600 = vmatprep.subr.mxu0 0.0
    %601 = vmatpush1.msra.mxu0 %v113
    %602 = vmatprep.subr.mxu0 0.0
    %603 = vmatpush1.msra.mxu0 %v114
    %604 = vmatprep.subr.mxu0 0.0
    %605 = vmatpush1.msra.mxu0 %v115
    %606 = vmatprep.subr.mxu0 0.0
    %607 = vmatpush1.msra.mxu0 %v116
    %608 = vmatprep.subr.mxu0 0.0
    %609 = vmatpush1.msra.mxu0 %v117
    %610 = vmatprep.subr.mxu0 0.0
    %611 = vmatpush1.msra.mxu0 %v118
    %612 = vmatprep.subr.mxu0 0.0
    %613 = vmatpush1.msra.mxu0 %v119
    %614 = vmatprep.subr.mxu0 0.0
    %615 = vmatpush1.msra.mxu0 %v120
    %616 = vmatprep.subr.mxu0 0.0
    %617 = vmatpush1.msra.mxu0 %v121
    %618 = vmatprep.mubr.f32.mxu0 %v350
    %619 = vmatmul.mubr.f32.gmra.mrb[0].mxu0 %v342
    %v620 = vpop.f32.mrb[0].mxu0
    %v621 = vadd.f32 %v551, %v620
    %v622 = vpop.f32.mrb[0].mxu0
    %623 = vdwg.mxu0
    %624 = vmatprep.subr.mxu0 0.0
    %625 = vmatpush1.msra.mxu0 %v122
    %626 = vmatprep.subr.mxu0 0.0
    %627 = vmatpush1.msra.mxu0 %v123
    %628 = vmatprep.subr.mxu0 0.0
    %629 = vmatpush1.msra.mxu0 %v124
    %630 = vmatprep.subr.mxu0 0.0
    %631 = vmatpush1.msra.mxu0 %v125
    %632 = vmatprep.subr.mxu0 0.0
    %633 = vmatpush1.msra.mxu0 %v126
    %634 = vmatprep.subr.mxu0 0.0
    %635 = vmatpush1.msra.mxu0 %v127
    %636 = vmatprep.subr.mxu0 0.0
    %637 = vmatpush1.msra.mxu0 %v128
    %638 = vmatprep.subr.mxu0 0.0
    %639 = vmatpush1.msra.mxu0 %v129
    %640 = vmatprep.subr.mxu0 0.0
    %641 = vmatpush1.msra.mxu0 %v130
    %642 = vmatprep.subr.mxu0 0.0
    %643 = vmatpush1.msra.mxu0 %v131
    %644 = vmatprep.subr.mxu0 0.0
    %645 = vmatpush1.msra.mxu0 %v132
    %646 = vmatprep.subr.mxu0 0.0
    %647 = vmatpush1.msra.mxu0 %v133
    %648 = vmatprep.subr.mxu0 0.0
    %649 = vmatpush1.msra.mxu0 %v134
    %650 = vmatprep.subr.mxu0 0.0
    %651 = vmatpush1.msra.mxu0 %v135
    %652 = vmatprep.subr.mxu0 0.0
    %653 = vmatpush1.msra.mxu0 %v136
    %654 = vmatprep.subr.mxu0 0.0
    %655 = vmatpush1.msra.mxu0 %v137
    %656 = vmatprep.subr.mxu0 0.0
    %657 = vmatpush1.msra.mxu0 %v138
    %658 = vmatprep.subr.mxu0 0.0
    %659 = vmatpush1.msra.mxu0 %v139
    %660 = vmatprep.subr.mxu0 0.0
    %661 = vmatpush1.msra.mxu0 %v140
    %662 = vmatprep.subr.mxu0 0.0
    %663 = vmatpush1.msra.mxu0 %v141
    %664 = vmatprep.subr.mxu0 0.0
    %665 = vmatpush1.msra.mxu0 %v142
    %666 = vmatprep.subr.mxu0 0.0
    %667 = vmatpush1.msra.mxu0 %v143
    %668 = vmatprep.subr.mxu0 0.0
    %669 = vmatpush1.msra.mxu0 %v144
    %670 = vmatprep.subr.mxu0 0.0
    %671 = vmatpush1.msra.mxu0 %v145
    %672 = vmatprep.subr.mxu0 0.0
    %673 = vmatpush1.msra.mxu0 %v146
    %674 = vmatprep.subr.mxu0 0.0
    %675 = vmatpush1.msra.mxu0 %v147
    %676 = vmatprep.subr.mxu0 0.0
    %677 = vmatpush1.msra.mxu0 %v148
    %678 = vmatprep.subr.mxu0 0.0
    %679 = vmatpush1.msra.mxu0 %v149
    %680 = vmatprep.subr.mxu0 0.0
    %681 = vmatpush1.msra.mxu0 %v150
    %682 = vmatprep.subr.mxu0 0.0
    %683 = vmatpush1.msra.mxu0 %v151
    %684 = vmatprep.subr.mxu0 0.0
    %685 = vmatpush1.msra.mxu0 %v152
    %686 = vmatprep.subr.mxu0 0.0
    %687 = vmatpush1.msra.mxu0 %v153
    %688 = vmatprep.mubr.f32.mxu0 %v351
    %689 = vmatmul.mubr.f32.gmra.mrb[0].mxu0 %v349
    %v690 = vpop.f32.mrb[0].mxu0
    %v691 = vadd.f32 %v621, %v690
    %v692 = vpop.f32.mrb[0].mxu0
    %693 = vdwg.mxu0
    %694 = vmatprep.subr.mxu0 0.0
    %695 = vmatpush1.msra.mxu0 %v154
    %696 = vmatprep.subr.mxu0 0.0
    %697 = vmatpush1.msra.mxu0 %v155
    %698 = vmatprep.subr.mxu0 0.0
    %699 = vmatpush1.msra.mxu0 %v156
    %700 = vmatprep.subr.mxu0 0.0
    %701 = vmatpush1.msra.mxu0 %v157
    %702 = vmatprep.subr.mxu0 0.0
    %703 = vmatpush1.msra.mxu0 %v158
    %704 = vmatprep.subr.mxu0 0.0
    %705 = vmatpush1.msra.mxu0 %v159
    %706 = vmatprep.subr.mxu0 0.0
    %707 = vmatpush1.msra.mxu0 %v160
    %708 = vmatprep.subr.mxu0 0.0
    %709 = vmatpush1.msra.mxu0 %v161
    %710 = vmatprep.subr.mxu0 0.0
    %711 = vmatpush1.msra.mxu0 %v162
    %712 = vmatprep.subr.mxu0 0.0
    %713 = vmatpush1.msra.mxu0 %v163
    %714 = vmatprep.subr.mxu0 0.0
    %715 = vmatpush1.msra.mxu0 %v164
    %716 = vmatprep.subr.mxu0 0.0
    %717 = vmatpush1.msra.mxu0 %v165
    %718 = vmatprep.subr.mxu0 0.0
    %719 = vmatpush1.msra.mxu0 %v166
    %720 = vmatprep.subr.mxu0 0.0
    %721 = vmatpush1.msra.mxu0 %v167
    %722 = vmatprep.subr.mxu0 0.0
    %723 = vmatpush1.msra.mxu0 %v168
    %724 = vmatprep.subr.mxu0 0.0
    %725 = vmatpush1.msra.mxu0 %v169
    %726 = vmatprep.subr.mxu0 0.0
    %727 = vmatpush1.msra.mxu0 %v170
    %728 = vmatprep.subr.mxu0 0.0
    %729 = vmatpush1.msra.mxu0 %v171
    %730 = vmatprep.subr.mxu0 0.0
    %731 = vmatpush1.msra.mxu0 %v172
    %732 = vmatprep.subr.mxu0 0.0
    %733 = vmatpush1.msra.mxu0 %v173
    %734 = vmatprep.subr.mxu0 0.0
    %735 = vmatpush1.msra.mxu0 %v174
    %736 = vmatprep.subr.mxu0 0.0
    %737 = vmatpush1.msra.mxu0 %v175
    %738 = vmatprep.subr.mxu0 0.0
    %739 = vmatpush1.msra.mxu0 %v176
    %740 = vmatprep.subr.mxu0 0.0
    %741 = vmatpush1.msra.mxu0 %v177
    %742 = vmatprep.subr.mxu0 0.0
    %743 = vmatpush1.msra.mxu0 %v178
    %744 = vmatprep.subr.mxu0 0.0
    %745 = vmatpush1.msra.mxu0 %v179
    %746 = vmatprep.subr.mxu0 0.0
    %747 = vmatpush1.msra.mxu0 %v180
    %748 = vmatprep.subr.mxu0 0.0
    %749 = vmatpush1.msra.mxu0 %v181
    %750 = vmatprep.subr.mxu0 0.0
    %751 = vmatpush1.msra.mxu0 %v182
    %752 = vmatprep.subr.mxu0 0.0
    %753 = vmatpush1.msra.mxu0 %v183
    %754 = vmatprep.subr.mxu0 0.0
    %755 = vmatpush1.msra.mxu0 %v184
    %756 = vmatprep.subr.mxu0 0.0
    %757 = vmatpush1.msra.mxu0 %v185
    %758 = vmatprep.mubr.f32.mxu0 %v367
    %759 = vmatmul.mubr.f32.gmra.mrb[0].mxu0 %v359
    %v760 = vpop.f32.mrb[0].mxu0
    %v761 = vadd.f32 %v691, %v760
    %v762 = vpop.f32.mrb[0].mxu0
    %763 = vdwg.mxu0
    %764 = vmatprep.subr.mxu0 0.0
    %765 = vmatpush1.msra.mxu0 %v186
    %766 = vmatprep.subr.mxu0 0.0
    %767 = vmatpush1.msra.mxu0 %v187
    %768 = vmatprep.subr.mxu0 0.0
    %769 = vmatpush1.msra.mxu0 %v188
    %770 = vmatprep.subr.mxu0 0.0
    %771 = vmatpush1.msra.mxu0 %v189
    %772 = vmatprep.subr.mxu0 0.0
    %773 = vmatpush1.msra.mxu0 %v190
    %774 = vmatprep.subr.mxu0 0.0
    %775 = vmatpush1.msra.mxu0 %v191
    %776 = vmatprep.subr.mxu0 0.0
    %777 = vmatpush1.msra.mxu0 %v192
    %778 = vmatprep.subr.mxu0 0.0
    %779 = vmatpush1.msra.mxu0 %v193
    %780 = vmatprep.subr.mxu0 0.0
    %781 = vmatpush1.msra.mxu0 %v194
    %782 = vmatprep.subr.mxu0 0.0
    %783 = vmatpush1.msra.mxu0 %v195
    %784 = vmatprep.subr.mxu0 0.0
    %785 = vmatpush1.msra.mxu0 %v196
    %786 = vmatprep.subr.mxu0 0.0
    %787 = vmatpush1.msra.mxu0 %v197
    %788 = vmatprep.subr.mxu0 0.0
    %789 = vmatpush1.msra.mxu0 %v198
    %790 = vmatprep.subr.mxu0 0.0
    %791 = vmatpush1.msra.mxu0 %v199
    %792 = vmatprep.subr.mxu0 0.0
    %793 = vmatpush1.msra.mxu0 %v200
    %794 = vmatprep.subr.mxu0 0.0
    %795 = vmatpush1.msra.mxu0 %v201
    %796 = vmatprep.subr.mxu0 0.0
    %797 = vmatpush1.msra.mxu0 %v202
    %798 = vmatprep.subr.mxu0 0.0
    %799 = vmatpush1.msra.mxu0 %v203
    %800 = vmatprep.subr.mxu0 0.0
    %801 = vmatpush1.msra.mxu0 %v204
    %802 = vmatprep.subr.mxu0 0.0
    %803 = vmatpush1.msra.mxu0 %v205
    %804 = vmatprep.subr.mxu0 0.0
    %805 = vmatpush1.msra.mxu0 %v206
    %806 = vmatprep.subr.mxu0 0.0
    %807 = vmatpush1.msra.mxu0 %v207
    %808 = vmatprep.subr.mxu0 0.0
    %809 = vmatpush1.msra.mxu0 %v208
    %810 = vmatprep.subr.mxu0 0.0
    %811 = vmatpush1.msra.mxu0 %v209
    %812 = vmatprep.subr.mxu0 0.0
    %813 = vmatpush1.msra.mxu0 %v210
    %814 = vmatprep.subr.mxu0 0.0
    %815 = vmatpush1.msra.mxu0 %v211
    %816 = vmatprep.subr.mxu0 0.0
    %817 = vmatpush1.msra.mxu0 %v212
    %818 = vmatprep.subr.mxu0 0.0
    %819 = vmatpush1.msra.mxu0 %v213
    %820 = vmatprep.subr.mxu0 0.0
    %821 = vmatpush1.msra.mxu0 %v214
    %822 = vmatprep.subr.mxu0 0.0
    %823 = vmatpush1.msra.mxu0 %v215
    %824 = vmatprep.subr.mxu0 0.0
    %825 = vmatpush1.msra.mxu0 %v216
    %826 = vmatprep.subr.mxu0 0.0
    %827 = vmatpush1.msra.mxu0 %v217
    %828 = vmatprep.mubr.f32.mxu0 %v368
    %829 = vmatmul.mubr.f32.gmra.mrb[0].mxu0 %v366
    %v830 = vpop.f32.mrb[0].mxu0
    %v831 = vadd.f32 %v761, %v830
    %v832 = vpop.f32.mrb[0].mxu0
    %833 = vdwg.mxu0
    %834 = vmatprep.subr.mxu0 0.0
    %835 = vmatpush1.msra.mxu0 %v218
    %836 = vmatprep.subr.mxu0 0.0
    %837 = vmatpush1.msra.mxu0 %v219
    %838 = vmatprep.subr.mxu0 0.0
    %839 = vmatpush1.msra.mxu0 %v220
    %840 = vmatprep.subr.mxu0 0.0
    %841 = vmatpush1.msra.mxu0 %v221
    %842 = vmatprep.subr.mxu0 0.0
    %843 = vmatpush1.msra.mxu0 %v222
    %844 = vmatprep.subr.mxu0 0.0
    %845 = vmatpush1.msra.mxu0 %v223
    %846 = vmatprep.subr.mxu0 0.0
    %847 = vmatpush1.msra.mxu0 %v224
    %848 = vmatprep.subr.mxu0 0.0
    %849 = vmatpush1.msra.mxu0 %v225
    %850 = vmatprep.subr.mxu0 0.0
    %851 = vmatpush1.msra.mxu0 %v226
    %852 = vmatprep.subr.mxu0 0.0
    %853 = vmatpush1.msra.mxu0 %v227
    %854 = vmatprep.subr.mxu0 0.0
    %855 = vmatpush1.msra.mxu0 %v228
    %856 = vmatprep.subr.mxu0 0.0
    %857 = vmatpush1.msra.mxu0 %v229
    %858 = vmatprep.subr.mxu0 0.0
    %859 = vmatpush1.msra.mxu0 %v230
    %860 = vmatprep.subr.mxu0 0.0
    %861 = vmatpush1.msra.mxu0 %v231
    %862 = vmatprep.subr.mxu0 0.0
    %863 = vmatpush1.msra.mxu0 %v232
    %864 = vmatprep.subr.mxu0 0.0
    %865 = vmatpush1.msra.mxu0 %v233
    %866 = vmatprep.subr.mxu0 0.0
    %867 = vmatpush1.msra.mxu0 %v234
    %868 = vmatprep.subr.mxu0 0.0
    %869 = vmatpush1.msra.mxu0 %v235
    %870 = vmatprep.subr.mxu0 0.0
    %871 = vmatpush1.msra.mxu0 %v236
    %872 = vmatprep.subr.mxu0 0.0
    %873 = vmatpush1.msra.mxu0 %v237
    %874 = vmatprep.subr.mxu0 0.0
    %875 = vmatpush1.msra.mxu0 %v238
    %876 = vmatprep.subr.mxu0 0.0
    %877 = vmatpush1.msra.mxu0 %v239
    %878 = vmatprep.subr.mxu0 0.0
    %879 = vmatpush1.msra.mxu0 %v240
    %880 = vmatprep.subr.mxu0 0.0
    %881 = vmatpush1.msra.mxu0 %v241
    %882 = vmatprep.subr.mxu0 0.0
    %883 = vmatpush1.msra.mxu0 %v242
    %884 = vmatprep.subr.mxu0 0.0
    %885 = vmatpush1.msra.mxu0 %v243
    %886 = vmatprep.subr.mxu0 0.0
    %887 = vmatpush1.msra.mxu0 %v244
    %888 = vmatprep.subr.mxu0 0.0
    %889 = vmatpush1.msra.mxu0 %v245
    %890 = vmatprep.subr.mxu0 0.0
    %891 = vmatpush1.msra.mxu0 %v246
    %892 = vmatprep.subr.mxu0 0.0
    %893 = vmatpush1.msra.mxu0 %v247
    %894 = vmatprep.subr.mxu0 0.0
    %895 = vmatpush1.msra.mxu0 %v248
    %896 = vmatprep.subr.mxu0 0.0
    %897 = vmatpush1.msra.mxu0 %v249
    %898 = vmatprep.mubr.f32.mxu0 %v384
    %899 = vmatmul.mubr.f32.gmra.mrb[0].mxu0 %v376
    %v900 = vpop.f32.mrb[0].mxu0
    %v901 = vadd.f32 %v831, %v900
    %v902 = vpop.f32.mrb[0].mxu0
    %903 = vdwg.mxu0
    %904 = vmatprep.subr.mxu0 0.0
    %905 = vmatpush1.msra.mxu0 %v250
    %906 = vmatprep.subr.mxu0 0.0
    %907 = vmatpush1.msra.mxu0 %v251
    %908 = vmatprep.subr.mxu0 0.0
    %909 = vmatpush1.msra.mxu0 %v252
    %910 = vmatprep.subr.mxu0 0.0
    %911 = vmatpush1.msra.mxu0 %v253
    %912 = vmatprep.subr.mxu0 0.0
    %913 = vmatpush1.msra.mxu0 %v254
    %914 = vmatprep.subr.mxu0 0.0
    %915 = vmatpush1.msra.mxu0 %v255
    %916 = vmatprep.subr.mxu0 0.0
    %917 = vmatpush1.msra.mxu0 %v256
    %918 = vmatprep.subr.mxu0 0.0
    %919 = vmatpush1.msra.mxu0 %v257
    %920 = vmatprep.subr.mxu0 0.0
    %921 = vmatpush1.msra.mxu0 %v258
    %922 = vmatprep.subr.mxu0 0.0
    %923 = vmatpush1.msra.mxu0 %v259
    %924 = vmatprep.subr.mxu0 0.0
    %925 = vmatpush1.msra.mxu0 %v260
    %926 = vmatprep.subr.mxu0 0.0
    %927 = vmatpush1.msra.mxu0 %v261
    %928 = vmatprep.subr.mxu0 0.0
    %929 = vmatpush1.msra.mxu0 %v262
    %930 = vmatprep.subr.mxu0 0.0
    %931 = vmatpush1.msra.mxu0 %v263
    %932 = vmatprep.subr.mxu0 0.0
    %933 = vmatpush1.msra.mxu0 %v264
    %934 = vmatprep.subr.mxu0 0.0
    %935 = vmatpush1.msra.mxu0 %v265
    %936 = vmatprep.subr.mxu0 0.0
    %937 = vmatpush1.msra.mxu0 %v266
    %938 = vmatprep.subr.mxu0 0.0
    %939 = vmatpush1.msra.mxu0 %v267
    %940 = vmatprep.subr.mxu0 0.0
    %941 = vmatpush1.msra.mxu0 %v268
    %942 = vmatprep.subr.mxu0 0.0
    %943 = vmatpush1.msra.mxu0 %v269
    %944 = vmatprep.subr.mxu0 0.0
    %945 = vmatpush1.msra.mxu0 %v270
    %946 = vmatprep.subr.mxu0 0.0
    %947 = vmatpush1.msra.mxu0 %v271
    %948 = vmatprep.subr.mxu0 0.0
    %949 = vmatpush1.msra.mxu0 %v272
    %950 = vmatprep.subr.mxu0 0.0
    %951 = vmatpush1.msra.mxu0 %v273
    %952 = vmatprep.subr.mxu0 0.0
    %953 = vmatpush1.msra.mxu0 %v274
    %954 = vmatprep.subr.mxu0 0.0
    %955 = vmatpush1.msra.mxu0 %v275
    %956 = vmatprep.subr.mxu0 0.0
    %957 = vmatpush1.msra.mxu0 %v276
    %958 = vmatprep.subr.mxu0 0.0
    %959 = vmatpush1.msra.mxu0 %v277
    %960 = vmatprep.subr.mxu0 0.0
    %961 = vmatpush1.msra.mxu0 %v278
    %962 = vmatprep.subr.mxu0 0.0
    %963 = vmatpush1.msra.mxu0 %v279
    %964 = vmatprep.subr.mxu0 0.0
    %965 = vmatpush1.msra.mxu0 %v280
    %966 = vmatprep.subr.mxu0 0.0
    %967 = vmatpush1.msra.mxu0 %v281
    %968 = vmatprep.mubr.f32.mxu0 %v385
    %969 = vmatmul.mubr.f32.gmra.mrb[0].mxu0 %v383
    %v970 = vpop.f32.mrb[0].mxu0
    %v971 = vadd.f32 %v901, %v970
    %v972 = vpop.f32.mrb[0].mxu0
    %973 = vdwg.mxu0
    %974 = vmatprep.subr.mxu0 0.0
    %975 = vmatpush1.msra.mxu0 %v282
    %976 = vmatprep.subr.mxu0 0.0
    %977 = vmatpush1.msra.mxu0 %v283
    %978 = vmatprep.subr.mxu0 0.0
    %979 = vmatpush1.msra.mxu0 %v284
    %980 = vmatprep.subr.mxu0 0.0
    %981 = vmatpush1.msra.mxu0 %v285
    %982 = vmatprep.subr.mxu0 0.0
    %983 = vmatpush1.msra.mxu0 %v286
    %984 = vmatprep.subr.mxu0 0.0
    %985 = vmatpush1.msra.mxu0 %v287
    %986 = vmatprep.subr.mxu0 0.0
    %987 = vmatpush1.msra.mxu0 %v288
    %988 = vmatprep.subr.mxu0 0.0
    %989 = vmatpush1.msra.mxu0 %v289
    %990 = vmatprep.subr.mxu0 0.0
    %991 = vmatpush1.msra.mxu0 %v290
    %992 = vmatprep.subr.mxu0 0.0
    %993 = vmatpush1.msra.mxu0 %v291
    %994 = vmatprep.subr.mxu0 0.0
    %995 = vmatpush1.msra.mxu0 %v292
    %996 = vmatprep.subr.mxu0 0.0
    %997 = vmatpush1.msra.mxu0 %v293
    %998 = vmatprep.subr.mxu0 0.0
    %999 = vmatpush1.msra.mxu0 %v294
    %1000 = vmatprep.subr.mxu0 0.0
    %1001 = vmatpush1.msra.mxu0 %v295
    %1002 = vmatprep.subr.mxu0 0.0
    %1003 = vmatpush1.msra.mxu0 %v296
    %1004 = vmatprep.subr.mxu0 0.0
    %1005 = vmatpush1.msra.mxu0 %v297
    %1006 = vmatprep.subr.mxu0 0.0
    %1007 = vmatpush1.msra.mxu0 %v298
    %1008 = vmatprep.subr.mxu0 0.0
    %1009 = vmatpush1.msra.mxu0 %v299
    %1010 = vmatprep.subr.mxu0 0.0
    %1011 = vmatpush1.msra.mxu0 %v300
    %1012 = vmatprep.subr.mxu0 0.0
    %1013 = vmatpush1.msra.mxu0 %v301
    %1014 = vmatprep.subr.mxu0 0.0
    %1015 = vmatpush1.msra.mxu0 %v302
    %1016 = vmatprep.subr.mxu0 0.0
    %1017 = vmatpush1.msra.mxu0 %v303
    %1018 = vmatprep.subr.mxu0 0.0
    %1019 = vmatpush1.msra.mxu0 %v304
    %1020 = vmatprep.subr.mxu0 0.0
    %1021 = vmatpush1.msra.mxu0 %v305
    %1022 = vmatprep.subr.mxu0 0.0
    %1023 = vmatpush1.msra.mxu0 0.0
    %1024 = vmatprep.subr.mxu0 0.0
    %1025 = vmatpush1.msra.mxu0 0.0
    %1026 = vmatprep.subr.mxu0 0.0
    %1027 = vmatpush1.msra.mxu0 0.0
    %1028 = vmatprep.subr.mxu0 0.0
    %1029 = vmatpush1.msra.mxu0 0.0
    %1030 = vmatprep.subr.mxu0 0.0
    %1031 = vmatpush1.msra.mxu0 0.0
    %1032 = vmatprep.subr.mxu0 0.0
    %1033 = vmatpush1.msra.mxu0 0.0
    %1034 = vmatprep.subr.mxu0 0.0
    %1035 = vmatpush1.msra.mxu0 0.0
    %1036 = vmatprep.subr.mxu0 0.0
    %1037 = vmatpush1.msra.mxu0 0.0
    %1038 = vmatprep.mubr.f32.mxu0 %v412
    %1039 = vmatmul.mubr.f32.gmra.mrb[0].mxu0 %v392
    %v1040 = vpop.f32.mrb[0].mxu0
    %v1041 = vadd.f32 %v971, %v1040
    %v1042 = vpop.f32.mrb[0].mxu0
    %1043 = vdwg.mxu0
    %v1044 = vmax.f32 %v1041, 0.0
    %v1045 = vld [vmem:[%s3] sm:$0xff]
    %v1046 = vld [vmem:[%s3 + $0x8] sm:$0xff]
    %v1047 = vld [vmem:[%s3 + $0x10] sm:$0xff]
    %v1048 = vld [vmem:[%s3 + $0x18] sm:$0xff]
    %v1049 = vld [vmem:[%s4] sm:$0x1]
    %v1051 = vlaneseq
    %v1052 = vshrl.u32 %v1051, 7
    %v1053 = vsub.s32 0, %v1052
    %v1054 = vrot.slane %v1049, %v1053
    %vm1056 = vcmask 261120
    %v1058 = vsel %vm1056, %v1044, 0
    %1060 = vmatprep.subr.mxu0 0.0
    %1061 = vmatpush1.msra.mxu0 %v1045
    %1062 = vmatprep.subr.mxu0 0.0
    %1063 = vmatpush1.msra.mxu0 %v1046
    %1064 = vmatprep.subr.mxu0 0.0
    %1065 = vmatpush1.msra.mxu0 %v1047
    %1066 = vmatprep.subr.mxu0 0.0
    %1067 = vmatpush1.msra.mxu0 %v1048
    %1068 = vmatprep.subr.mxu0 0.0
    %1069 = vmatpush1.msra.mxu0 0.0
    %1070 = vmatprep.subr.mxu0 0.0
    %1071 = vmatpush1.msra.mxu0 0.0
    %1072 = vmatprep.subr.mxu0 0.0
    %1073 = vmatpush1.msra.mxu0 0.0
    %1074 = vmatprep.subr.mxu0 0.0
    %1075 = vmatpush1.msra.mxu0 0.0
    %1076 = vmatprep.subr.mxu0 0.0
    %1077 = vmatpush1.msra.mxu0 0.0
    %1078 = vmatprep.subr.mxu0 0.0
    %1079 = vmatpush1.msra.mxu0 0.0
    %1080 = vmatprep.subr.mxu0 0.0
    %1081 = vmatpush1.msra.mxu0 0.0
    %1082 = vmatprep.subr.mxu0 0.0
    %1083 = vmatpush1.msra.mxu0 0.0
    %1084 = vmatprep.subr.mxu0 0.0
    %1085 = vmatpush1.msra.mxu0 0.0
    %1086 = vmatprep.subr.mxu0 0.0
    %1087 = vmatpush1.msra.mxu0 0.0
    %1088 = vmatprep.subr.mxu0 0.0
    %1089 = vmatpush1.msra.mxu0 0.0
    %1090 = vmatprep.subr.mxu0 0.0
    %1091 = vmatpush1.msra.mxu0 0.0
    %1092 = vmatprep.subr.mxu0 0.0
    %1093 = vmatpush1.msra.mxu0 0.0
    %1094 = vmatprep.subr.mxu0 0.0
    %1095 = vmatpush1.msra.mxu0 0.0
    %1096 = vmatprep.subr.mxu0 0.0
    %1097 = vmatpush1.msra.mxu0 0.0
    %1098 = vmatprep.subr.mxu0 0.0
    %1099 = vmatpush1.msra.mxu0 0.0
    %1100 = vmatprep.subr.mxu0 0.0
    %1101 = vmatpush1.msra.mxu0 0.0
    %1102 = vmatprep.subr.mxu0 0.0
    %1103 = vmatpush1.msra.mxu0 0.0
    %1104 = vmatprep.subr.mxu0 0.0
    %1105 = vmatpush1.msra.mxu0 0.0
    %1106 = vmatprep.subr.mxu0 0.0
    %1107 = vmatpush1.msra.mxu0 0.0
    %1108 = vmatprep.subr.mxu0 0.0
    %1109 = vmatpush1.msra.mxu0 0.0
    %1110 = vmatprep.subr.mxu0 0.0
    %1111 = vmatpush1.msra.mxu0 0.0
    %1112 = vmatprep.subr.mxu0 0.0
    %1113 = vmatpush1.msra.mxu0 0.0
    %1114 = vmatprep.subr.mxu0 0.0
    %1115 = vmatpush1.msra.mxu0 0.0
    %1116 = vmatprep.subr.mxu0 0.0
    %1117 = vmatpush1.msra.mxu0 0.0
    %1118 = vmatprep.subr.mxu0 0.0
    %1119 = vmatpush1.msra.mxu0 0.0
    %1120 = vmatprep.subr.mxu0 0.0
    %1121 = vmatpush1.msra.mxu0 0.0
    %1122 = vmatprep.subr.mxu0 0.0
    %1123 = vmatpush1.msra.mxu0 0.0
    %1124 = vmatprep.mubr.f32.mxu0 0.0
    %1125 = vmatmul.mubr.f32.gmra.mrb[0].mxu0 %v1058
    %v1126 = vpop.f32.mrb[0].mxu0
    %v1127 = vadd.f32 %v1054, %v1126
    %v1128 = vpop.f32.mrb[0].mxu0
    %1129 = vdwg.mxu0
    %v1130 = vmax.f32 %v1127, 0.0
    %vm1131 = vcmask 254976
    %1132 = vst.msk [vmem:[#allocation2] sm:$0x3] %vm1131, %v1130
    // Predicated region
    $region22: #{cnn_base_forward.3} parent=1 // pred_check
      _
    $region23: #{cnn_base_forward.3} parent=1 // pred_check_branch
      %1134 = sbr.rel (0) target = $region25
    $region24: #{cnn_base_forward.3} parent=1 // pred_region
      %s1136 = ssub.s32 32, 32
      %1137 = vsyncadd [#allocation3], %s1136
      %s1139 = sshll.u32 [#allocation2], 4
      %s1140 = int_to_ptr.vmem [resolvable:$true] %s1139
      %1142 = dma.vmem_to_hbm [thread:$0]  %s1140, 32, %s5, [#allocation3]
    $region25: #{cnn_base_forward.3} parent=1 // pred_fallthru
      _
    // Predicated region
    $region26: #{cnn_base_forward.3} parent=1 // pred_check
      _
    $region27: #{cnn_base_forward.3} parent=1 // pred_check_branch
      %1144 = sbr.rel (0) target = $region29
    $region28: #{cnn_base_forward.3} parent=1 // pred_region
      %1145 = dma.done [#allocation3], 32
    $region29: #{cnn_base_forward.3} parent=1 // pred_fallthru
      _
    %1146 = vsyncpa [#allocation3], 1

</llo_original>
